<compile_context>
chip_gen: v5e
topology: v5e:2x2
jax: 0.10.0
libtpu: 0.0.40
codegen_flags: <defaults>
</compile_context>

<pallas_src>
import jax
import jax.numpy as jnp
from jax.experimental import pallas as pl
from jax.experimental.pallas import tpu as pltpu

H = W = 40                 # input spatial size
CIN = 3
C1 = 64                    # conv*_1 output channels
K1 = 9                     # conv*_1 kernel size
C2 = 20                    # conv*_2 output channels
QH = H // 4                # avg-pooled quadrant spatial size (10)
PH = QH + 2                # padded quadrant size (12)
OH1 = PH - K1 + 1          # conv*_1 output spatial size (4)
NPOS1 = OH1 * OH1          # 16
F1 = CIN * PH * PH         # 432  flattened padded quadrant
F1P = 512                  # F1 padded to a multiple of 128 (aligned DMA / MXU K)
N1 = NPOS1 * C1            # 1024 dense conv1-matmul output width (pos-major)
OUT_F = C1 + C2            # 84   per-quadrant features
OUT_PAD = 128              # lane-dense output width
BT_MAX = 256               # max batch rows fused per grid step


# ----------------------------- Pallas kernel ------------------------------- #
def cnn4b_kernel(a_ref, w1_ref, b1_ref, w2_ref, b2_ref, out_ref):
    # a_ref  : (1, 1, BT, 512)  bf16  padded quadrant pixels, features (c, r, col)
    # w1_ref : (1, 512, 1024)   bf16  conv1-as-dense-matmul weights, pos-major cols
    # b1_ref : (1, 1, 64)       f32
    # w2_ref : (1, 64, 80)      bf16  conv2's 4 taps fused along lanes
    # b2_ref : (1, 1, 20)       f32
    # out_ref: (1, BT, 128)     f32   [:64]=pool1 flat, [64:84]=pool2 flat, rest 0
    a = a_ref[0, 0]                                                    # (BT, 512)
    c1 = jnp.dot(a, w1_ref[0], preferred_element_type=jnp.float32)     # (BT, 1024)

    # MaxPool2d(4) over the 4x4 conv1 map == max over the 16 position column
    # groups; done as a log2 tree of lane-aligned (512/256/128/64) maxima.
    m = c1
    width = N1
    while width > C1:
        width //= 2
        m = jnp.maximum(m[:, :width], m[:, width:])
    x1 = m + b1_ref[0]            # bias after pooling (position-invariant)  (BT, 64)

    # conv{i}_2 (2x2, pad=1) on the 1x1 pooled map: its 4 output positions are
    # four (64 -> 20) matmuls fused as one (64 -> 80) matmul; MaxPool2d(2) is a
    # max over the four 20-wide slices.  Bias added once after the max.
    w2 = w2_ref[0]                                                      # (64, 80)
    y4 = jnp.dot(x1.astype(w2.dtype), w2,
                 preferred_element_type=jnp.float32)                    # (BT, 80)
    y = jnp.maximum(jnp.maximum(y4[:, 0:C2], y4[:, C2:2 * C2]),
                    jnp.maximum(y4[:, 2 * C2:3 * C2], y4[:, 3 * C2:4 * C2]))
    y = y + b2_ref[0]                                                    # (BT, 20)

    pad = jnp.zeros((x1.shape[0], OUT_PAD - OUT_F), jnp.float32)
    out_ref[0] = jnp.concatenate([x1, y, pad], axis=-1)                  # (BT, 128)


def cnn4b_pallas(a, w1, b1, w2, b2, bt):
    # a: (4, nB, bt, 512); weights packed per quadrant.
    nb = a.shape[1]
    b_pad = nb * bt
    return pl.pallas_call(
        cnn4b_kernel,
        out_shape=jax.ShapeDtypeStruct((4, b_pad, OUT_PAD), jnp.float32),
        grid=(4, nb),   # quadrant outermost -> weight blocks resident across batch loop
        in_specs=[
            pl.BlockSpec((1, 1, bt, F1P), lambda i, b: (i, b, 0, 0)),
            pl.BlockSpec((1, F1P, N1), lambda i, b: (i, 0, 0)),
            pl.BlockSpec((1, 1, C1), lambda i, b: (i, 0, 0)),
            pl.BlockSpec((1, C1, 4 * C2), lambda i, b: (i, 0, 0)),
            pl.BlockSpec((1, 1, C2), lambda i, b: (i, 0, 0)),
        ],
        out_specs=pl.BlockSpec((1, bt, OUT_PAD), lambda i, b: (i, b, 0)),
        compiler_params=pltpu.CompilerParams(
            dimension_semantics=("parallel", "parallel")),
    )(a, w1, b1, w2, b2)


# ------------------------------- glue (JAX) -------------------------------- #
def split_quadrants_and_avgpool(x):
    # x: (B, 3, H, W) NCHW.  Reproduces x.unfold(2,H/2,H/2).unfold(3,W/2,W/2)
    # quadrant ordering (TL, TR, BL, BR), then AvgPool2d(2).
    B, C, Hh, Ww = x.shape
    hh, ww = Hh // 2, Ww // 2
    p = x.reshape(B, C, 2, hh, 2, ww).transpose(0, 1, 2, 4, 3, 5)
    p = p.reshape(B, C, 4, hh, ww)
    q = p.reshape(B, C, 4, hh // 2, 2, ww // 2, 2).mean(axis=(4, 6))
    return q                                             # (B, C, 4, QH, QH)


def build_a(x_padded, bt):
    # -> (4, nB, bt, 512) bf16: per-quadrant conv-padded pixels, features (c, r, col).
    b_pad = x_padded.shape[0]
    nb = b_pad // bt
    q = split_quadrants_and_avgpool(x_padded)                        # (Bp, 3, 4, 10, 10)
    qp = jnp.pad(q, ((0, 0), (0, 0), (0, 0), (1, 1), (1, 1)))        # conv1 padding=1
    a = qp.transpose(2, 0, 1, 3, 4).reshape(4, b_pad, F1)            # quadrant-major
    a = jnp.pad(a, ((0, 0), (0, 0), (0, F1P - F1))).astype(jnp.bfloat16)
    return a.reshape(4, nb, bt, F1P)


def init_params(key):
    params = []
    for _ in range(4):
        key, k1, k2, k3, k4 = jax.random.split(key, 5)
        w1 = jax.random.normal(k1, (C1, CIN, K1, K1), jnp.float32) * 0.05
        b1 = jax.random.normal(k2, (C1,), jnp.float32) * 0.05
        w2 = jax.random.normal(k3, (C2, C1, 2, 2), jnp.float32) * 0.05
        b2 = jax.random.normal(k4, (C2,), jnp.float32) * 0.05
        params.append((w1, b1, w2, b2))
    return params


def pack_w1_dense(w1):
    # w1: (64, 3, 9, 9) -> (512, 1024).  Column group `pos = oh*4 + ow` holds the
    # kernel scattered onto the padded 12x12 map at offset (oh, ow), so
    # a_flat @ W == conv1(quadrant, w1) evaluated at all 16 output positions.
    cols = []
    for oh in range(OH1):
        for ow in range(OH1):
            wz = jnp.zeros((C1, CIN, PH, PH), w1.dtype)
            wz = wz.at[:, :, oh:oh + K1, ow:ow + K1].set(w1)
            cols.append(wz.reshape(C1, F1).T)                         # (432, 64)
    wd = jnp.concatenate(cols, axis=1)                                 # (432, 1024)
    return jnp.pad(wd, ((0, F1P - F1), (0, 0)))                        # (512, 1024)


def pack_params(params, dtype=jnp.bfloat16):
    # conv2 output position (oh, ow) of the padded 2x2 conv on a 1x1 map hits
    # tap (1-oh, 1-ow); tap order is irrelevant since we max over all four.
    pos_taps = [(1, 1), (1, 0), (0, 1), (0, 0)]
    w1s, b1s, w2s, b2s = [], [], [], []
    for (w1, b1, w2, b2) in params:
        w1s.append(pack_w1_dense(w1).astype(dtype))
        b1s.append(b1.reshape(1, C1))
        w2s.append(jnp.concatenate(
            [w2[:, :, kh, kw].T.astype(dtype) for kh, kw in pos_taps], axis=1))  # (64, 80)
        b2s.append(b2.reshape(1, C2))
    return (jnp.stack(w1s), jnp.stack(b1s).astype(jnp.float32),
            jnp.stack(w2s), jnp.stack(b2s).astype(jnp.float32))


@jax.jit
def cnn4b_forward(x, W1, B1, W2, B2):
    B = x.shape[0]
    bt = min(BT_MAX, max(8, -(-B // 8) * 8))          # adaptive batch tile
    b_pad = -(-B // bt) * bt
    if b_pad != B:
        x = jnp.pad(x, ((0, b_pad - B), (0, 0), (0, 0), (0, 0)))
    a = build_a(x, bt)
    out = cnn4b_pallas(a, W1, B1, W2, B2, bt)         # (4, b_pad, 128)
    out = out[:, :B, :OUT_F].transpose(1, 0, 2)       # (B, 4, 84)
    return out.reshape(B, 4 * OUT_F)                  # (B, 336)


# --------------------------- pure-JAX reference ----------------------------- #
def reference_forward(x, params):
    B = x.shape[0]
    q = split_quadrants_and_avgpool(x)
    outs = []
    for i in range(4):
        w1, b1, w2, b2 = params[i]
        xi = q[:, :, i]
        c1 = jax.lax.conv_general_dilated(
            xi, w1, (1, 1), ((1, 1), (1, 1)),
            dimension_numbers=("NCHW", "OIHW", "NCHW"),
            precision=jax.lax.Precision.HIGHEST) + b1[None, :, None, None]
        x1 = jax.lax.reduce_window(c1, -jnp.inf, jax.lax.max,
                                   (1, 1, 4, 4), (1, 1, 4, 4), "VALID")
        c2 = jax.lax.conv_general_dilated(
            x1, w2, (1, 1), ((1, 1), (1, 1)),
            dimension_numbers=("NCHW", "OIHW", "NCHW"),
            precision=jax.lax.Precision.HIGHEST) + b2[None, :, None, None]
        y1 = jax.lax.reduce_window(c2, -jnp.inf, jax.lax.max,
                                   (1, 1, 2, 2), (1, 1, 2, 2), "VALID")
        outs.append(jnp.concatenate([x1.reshape(B, -1), y1.reshape(B, -1)], axis=1))
    return jnp.stack(outs, axis=1).reshape(B, -1)


if __name__ == "__main__":
    key = jax.random.PRNGKey(0)
    kx, kp = jax.random.split(key)
    x = jax.random.normal(kx, (2, CIN, H, W), jnp.float32)
    params = init_params(kp)
    W1, B1, W2, B2 = pack_params(params)

    out = jax.block_until_ready(cnn4b_forward(x, W1, B1, W2, B2))
    assert out.shape == (2, 4 * OUT_F), out.shape

    ref = reference_forward(x, params)
    assert jnp.allclose(out, ref, rtol=2e-2, atol=2e-2), float(jnp.max(jnp.abs(out - ref)))

    print("KERNEL_OK")
</pallas_src>

<mosaic_0001>
module attributes {stable_mosaic.version = 11 : i64} {
  func.func @cnn4b_kernel(%arg0: i32, %arg1: i32, %arg2: memref<1x1x8x512xbf16, #tpu.memory_space<vmem>>, %arg3: memref<1x512x1024xbf16, #tpu.memory_space<vmem>>, %arg4: memref<1x1x64xf32, #tpu.memory_space<vmem>>, %arg5: memref<1x64x80xbf16, #tpu.memory_space<vmem>>, %arg6: memref<1x1x20xf32, #tpu.memory_space<vmem>>, %arg7: memref<1x8x128xf32, #tpu.memory_space<vmem>>) attributes {dimension_semantics = [#tpu.dimension_semantics<parallel>, #tpu.dimension_semantics<parallel>], iteration_bounds = array<i64: 4, 1>, scalar_prefetch = 0 : i64, scratch_operands = 0 : i64, tpu.core_type = #tpu.core_type<tc>, window_params = [{transform_indices = @transform_0, window_bounds = array<i64: 1, 1, 8, 512>}, {transform_indices = @transform_1, window_bounds = array<i64: 1, 512, 1024>}, {transform_indices = @transform_2, window_bounds = array<i64: 1, 1, 64>}, {transform_indices = @transform_3, window_bounds = array<i64: 1, 64, 80>}, {transform_indices = @transform_4, window_bounds = array<i64: 1, 1, 20>}, {transform_indices = @transform_5, window_bounds = array<i64: 1, 8, 128>}]} {
    %c0 = arith.constant 0 : index
    %c0_0 = arith.constant 0 : index
    %c0_1 = arith.constant 0 : index
    %c0_2 = arith.constant 0 : index
    %0 = vector.load %arg2[%c0, %c0_0, %c0_1, %c0_2] : memref<1x1x8x512xbf16, #tpu.memory_space<vmem>>, vector<1x1x8x512xbf16>
    %1 = vector.shape_cast %0 : vector<1x1x8x512xbf16> to vector<8x512xbf16>
    %c0_3 = arith.constant 0 : index
    %c0_4 = arith.constant 0 : index
    %c0_5 = arith.constant 0 : index
    %2 = vector.load %arg3[%c0_3, %c0_4, %c0_5] : memref<1x512x1024xbf16, #tpu.memory_space<vmem>>, vector<1x512x1024xbf16>
    %3 = vector.shape_cast %2 : vector<1x512x1024xbf16> to vector<512x1024xbf16>
    %cst = arith.constant dense<0.000000e+00> : vector<8x1024xf32>
    %4 = tpu.matmul %1, %3, %cst {dimension_numbers = #tpu.dot_dimension_numbers<[1], [0], [0], [1], [0, 0, 1, 1], [], []>} : vector<8x512xbf16>, vector<512x1024xbf16>, vector<8x1024xf32> -> vector<8x1024xf32>
    %5 = vector.extract_strided_slice %4 {offsets = [0, 0], sizes = [8, 512], strides = [1, 1]} : vector<8x1024xf32> to vector<8x512xf32>
    %6 = vector.extract_strided_slice %4 {offsets = [0, 512], sizes = [8, 512], strides = [1, 1]} : vector<8x1024xf32> to vector<8x512xf32>
    %7 = arith.maximumf %5, %6 : vector<8x512xf32>
    %8 = vector.extract_strided_slice %7 {offsets = [0, 0], sizes = [8, 256], strides = [1, 1]} : vector<8x512xf32> to vector<8x256xf32>
    %9 = vector.extract_strided_slice %7 {offsets = [0, 256], sizes = [8, 256], strides = [1, 1]} : vector<8x512xf32> to vector<8x256xf32>
    %10 = arith.maximumf %8, %9 : vector<8x256xf32>
    %11 = vector.extract_strided_slice %10 {offsets = [0, 0], sizes = [8, 128], strides = [1, 1]} : vector<8x256xf32> to vector<8x128xf32>
    %12 = vector.extract_strided_slice %10 {offsets = [0, 128], sizes = [8, 128], strides = [1, 1]} : vector<8x256xf32> to vector<8x128xf32>
    %13 = arith.maximumf %11, %12 : vector<8x128xf32>
    %14 = vector.extract_strided_slice %13 {offsets = [0, 0], sizes = [8, 64], strides = [1, 1]} : vector<8x128xf32> to vector<8x64xf32>
    %15 = vector.extract_strided_slice %13 {offsets = [0, 64], sizes = [8, 64], strides = [1, 1]} : vector<8x128xf32> to vector<8x64xf32>
    %16 = arith.maximumf %14, %15 : vector<8x64xf32>
    %c0_6 = arith.constant 0 : index
    %c0_7 = arith.constant 0 : index
    %c0_8 = arith.constant 0 : index
    %17 = vector.load %arg4[%c0_6, %c0_7, %c0_8] : memref<1x1x64xf32, #tpu.memory_space<vmem>>, vector<1x1x64xf32>
    %18 = vector.shape_cast %17 : vector<1x1x64xf32> to vector<1x64xf32>
    %19 = vector.broadcast %18 : vector<1x64xf32> to vector<8x64xf32>
    %20 = arith.addf %16, %19 : vector<8x64xf32>
    %c0_9 = arith.constant 0 : index
    %c0_10 = arith.constant 0 : index
    %c0_11 = arith.constant 0 : index
    %21 = vector.load %arg5[%c0_9, %c0_10, %c0_11] : memref<1x64x80xbf16, #tpu.memory_space<vmem>>, vector<1x64x80xbf16>
    %22 = vector.shape_cast %21 : vector<1x64x80xbf16> to vector<64x80xbf16>
    %23 = arith.truncf %20 : vector<8x64xf32> to vector<8x64xbf16>
    %cst_12 = arith.constant dense<0.000000e+00> : vector<8x80xf32>
    %24 = tpu.matmul %23, %22, %cst_12 {dimension_numbers = #tpu.dot_dimension_numbers<[1], [0], [0], [1], [0, 0, 1, 1], [], []>} : vector<8x64xbf16>, vector<64x80xbf16>, vector<8x80xf32> -> vector<8x80xf32>
    %25 = vector.extract_strided_slice %24 {offsets = [0, 0], sizes = [8, 20], strides = [1, 1]} : vector<8x80xf32> to vector<8x20xf32>
    %26 = vector.extract_strided_slice %24 {offsets = [0, 20], sizes = [8, 20], strides = [1, 1]} : vector<8x80xf32> to vector<8x20xf32>
    %27 = arith.maximumf %25, %26 : vector<8x20xf32>
    %28 = vector.extract_strided_slice %24 {offsets = [0, 40], sizes = [8, 20], strides = [1, 1]} : vector<8x80xf32> to vector<8x20xf32>
    %29 = vector.extract_strided_slice %24 {offsets = [0, 60], sizes = [8, 20], strides = [1, 1]} : vector<8x80xf32> to vector<8x20xf32>
    %30 = arith.maximumf %28, %29 : vector<8x20xf32>
    %31 = arith.maximumf %27, %30 : vector<8x20xf32>
    %c0_13 = arith.constant 0 : index
    %c0_14 = arith.constant 0 : index
    %c0_15 = arith.constant 0 : index
    %32 = vector.load %arg6[%c0_13, %c0_14, %c0_15] : memref<1x1x20xf32, #tpu.memory_space<vmem>>, vector<1x1x20xf32>
    %33 = vector.shape_cast %32 : vector<1x1x20xf32> to vector<1x20xf32>
    %34 = vector.broadcast %33 : vector<1x20xf32> to vector<8x20xf32>
    %35 = arith.addf %31, %34 : vector<8x20xf32>
    %cst_16 = arith.constant 0.000000e+00 : f32
    %36 = vector.broadcast %cst_16 : f32 to vector<8x44xf32>
    %37 = tpu.concatenate %20, %35, %36 in 1 : vector<8x64xf32>, vector<8x20xf32>, vector<8x44xf32> -> vector<8x128xf32>
    %c0_17 = arith.constant 0 : index
    %c0_18 = arith.constant 0 : index
    %c0_19 = arith.constant 0 : index
    %38 = vector.load %arg7[%c0_17, %c0_18, %c0_19] : memref<1x8x128xf32, #tpu.memory_space<vmem>>, vector<1x8x128xf32>
    %39 = vector.shape_cast %38 : vector<1x8x128xf32> to vector<8x128xf32>
    %40 = vector.shape_cast %37 : vector<8x128xf32> to vector<1x8x128xf32>
    tpu.vector_store %arg7[%c0_17, %c0_18, %c0_19], %40 {strides = array<i32>} : memref<1x8x128xf32, #tpu.memory_space<vmem>>, vector<1x8x128xf32>,
    return
  }
  func.func @transform_0(%arg0: i32, %arg1: i32) -> (i32, i32, i32, i32) {
    %c0_i32 = arith.constant 0 : i32
    %c0_i32_0 = arith.constant 0 : i32
    %c0_i32_1 = arith.constant 0 : i32
    return %arg0, %arg1, %c0_i32, %c0_i32_0 : i32, i32, i32, i32
  }
  func.func @transform_1(%arg0: i32, %arg1: i32) -> (i32, i32, i32) {
    %c0_i32 = arith.constant 0 : i32
    %c0_i32_0 = arith.constant 0 : i32
    %c0_i32_1 = arith.constant 0 : i32
    return %arg0, %c0_i32, %c0_i32_0 : i32, i32, i32
  }
  func.func @transform_2(%arg0: i32, %arg1: i32) -> (i32, i32, i32) {
    %c0_i32 = arith.constant 0 : i32
    %c0_i32_0 = arith.constant 0 : i32
    %c0_i32_1 = arith.constant 0 : i32
    return %arg0, %c0_i32, %c0_i32_0 : i32, i32, i32
  }
  func.func @transform_3(%arg0: i32, %arg1: i32) -> (i32, i32, i32) {
    %c0_i32 = arith.constant 0 : i32
    %c0_i32_0 = arith.constant 0 : i32
    %c0_i32_1 = arith.constant 0 : i32
    return %arg0, %c0_i32, %c0_i32_0 : i32, i32, i32
  }
  func.func @transform_4(%arg0: i32, %arg1: i32) -> (i32, i32, i32) {
    %c0_i32 = arith.constant 0 : i32
    %c0_i32_0 = arith.constant 0 : i32
    %c0_i32_1 = arith.constant 0 : i32
    return %arg0, %c0_i32, %c0_i32_0 : i32, i32, i32
  }
  func.func @transform_5(%arg0: i32, %arg1: i32) -> (i32, i32, i32) {
    %c0_i32 = arith.constant 0 : i32
    %c0_i32_0 = arith.constant 0 : i32
    return %arg0, %arg1, %c0_i32 : i32, i32, i32
  }
}

</mosaic_0001>

<llo_original>
// kernel: cnn4b_forward.1
$region0: #{cnn4b_forward.1}
  #allocation0 [shape = 'u32[]', space=smem, size = 0x4, offset = 0x4, fixed_abs, tag = 'smem constant byte address 0x4 - core index']
  #allocation1 [shape = 'u32[72,128]{1,0:T(1,128)}', space=vmem, size = 0x9000, scoped, tag = 'internal scratch']
  %s0 = inlined_call_operand.vmem [shape: bf16[4,1,8,512], index: 0, kind: input, shape index: {}]
  %s1 = inlined_call_operand.vmem [shape: bf16[4,512,1024], index: 1, kind: input, shape index: {}]
  %s2 = inlined_call_operand.vmem [shape: f32[4,1,64], index: 2, kind: input, shape index: {}]
  %s3 = inlined_call_operand.vmem [shape: bf16[4,64,80], index: 3, kind: input, shape index: {}]
  %s4 = inlined_call_operand.vmem [shape: f32[4,1,20], index: 4, kind: input, shape index: {}]
  %s5 = inlined_call_operand.vmem [shape: f32[4,8,128], index: 5, kind: output, shape index: {}]
  %s6 = sld [smem:[#allocation0]]
  $region53: #{cnn4b_forward.1} parent=0
    _
  %s8 = ssub.s32 1, %s6
  %s9 = scalar_select 0, %s8, %s6
  loop: start=0, step=1, limit=6
  $region2: #{cnn4b_forward.1} parent=0 // loop_pre_header
    _
  $region3: #{cnn4b_forward.1} parent=0 // loop_header
    %s11 = sphi 0, %s15
    %p12 = scmp.ge.s32.totalorder %s11, 6
    %s18 = sphi 0, %s30
    %s19 = sphi 0, %s26
    %s20 = sphi 0, %s18
    %s21 = sphi 0, %s19
    %s22 = sphi 0, %s20
    %s23 = sphi 0, %s21
    %s35 = sphi 0, %s37
    %s38 = sphi 0, %s35
    %s39 = sphi 0, %s38
    %s55 = sphi 0, %s39
    %s61 = sphi 0, %s63
    %s64 = sphi 0, %s61
    %s65 = sphi 0, %s64
    %s81 = sphi 0, %s65
    %s87 = sphi 0, %s89
    %s90 = sphi 0, %s87
    %s91 = sphi 0, %s90
    %s107 = sphi 0, %s91
    %s113 = sphi 0, %s115
    %s116 = sphi 0, %s113
    %s117 = sphi 0, %s116
    %s133 = sphi 0, %s117
    %s139 = sphi 0, %s141
    %s142 = sphi 0, %s139
    %s143 = sphi 0, %s142
    %s159 = sphi 0, %s143
    %s167 = sphi 0, %s169
    %s170 = sphi 0, %s167
    %s171 = sphi 0, %s170
    %s187 = sphi 0, %s171
  $region4: #{cnn4b_forward.1} parent=0 // loop_header_branch
    %14 = sbr.rel (%p12) target = $region8
  $region5: #{cnn4b_forward.1} parent=0 // loop_body
    %s16 = ssub.s32 %s11, 1
    %s17 = ssub.s32 %s11, 2
    %s24 = sadd.s32 1, %s19
    %p25 = scmp.ge.s32.totalorder %s24, 1
    %s26 = scalar_select %p25, 0, %s24
    %s27 = sadd.s32 1, %s18
    %s28 = scalar_select %p25, %s27, %s18
    %p29 = scmp.ge.s32.totalorder %s28, 4
    %s30 = scalar_select %p29, 0, %s28
    %s31 = ssub.s32 %s18, %s30
    %s32 = ssub.s32 %s19, %s26
    %s33 = sor.u32 %s31, %s32
    %p34 = scmp.eq.s32.totalorder %s33, 0
    %s36 = sadd.s32 %s35, 1
    %s37 = scalar_select %p34, %s35, %s36
    %p40 = pneg %p34
    %p41 = scmp.eq.s32.totalorder %s11, 3
    %p42 = por %p40, %p41
    %p43 = scmp.ne.s32.totalorder %s35, %s38
    %p44 = scmp.eq.s32.totalorder %s11, 0
    %p45 = por %p43, %p44
    %p46 = scmp.ne.s32.totalorder %s35, %s38
    %p47 = scmp.eq.s32.totalorder %s16, 3
    %p48 = por %p46, %p47
    %p49 = scmp.ne.s32.totalorder %s38, %s39
    %p50 = scmp.eq.s32.totalorder %s16, 0
    %p51 = por %p49, %p50
    %p52 = scmp.ne.s32.totalorder %s38, %s39
    %p53 = scmp.eq.s32.totalorder %s17, 3
    %p54 = por %p52, %p53
    %p56 = scmp.ne.s32.totalorder %s39, %s55
    %p57 = scmp.eq.s32.totalorder %s17, 0
    %p58 = por %p56, %p57
    %s59 = ssub.s32 %s18, %s30
    %p60 = scmp.eq.s32.totalorder %s59, 0
    %s62 = sadd.s32 %s61, 1
    %s63 = scalar_select %p60, %s61, %s62
    %p66 = pneg %p60
    %p67 = scmp.eq.s32.totalorder %s11, 3
    %p68 = por %p66, %p67
    %p69 = scmp.ne.s32.totalorder %s61, %s64
    %p70 = scmp.eq.s32.totalorder %s11, 0
    %p71 = por %p69, %p70
    %p72 = scmp.ne.s32.totalorder %s61, %s64
    %p73 = scmp.eq.s32.totalorder %s16, 3
    %p74 = por %p72, %p73
    %p75 = scmp.ne.s32.totalorder %s64, %s65
    %p76 = scmp.eq.s32.totalorder %s16, 0
    %p77 = por %p75, %p76
    %p78 = scmp.ne.s32.totalorder %s64, %s65
    %p79 = scmp.eq.s32.totalorder %s17, 3
    %p80 = por %p78, %p79
    %p82 = scmp.ne.s32.totalorder %s65, %s81
    %p83 = scmp.eq.s32.totalorder %s17, 0
    %p84 = por %p82, %p83
    %s85 = ssub.s32 %s18, %s30
    %p86 = scmp.eq.s32.totalorder %s85, 0
    %s88 = sadd.s32 %s87, 1
    %s89 = scalar_select %p86, %s87, %s88
    %p92 = pneg %p86
    %p93 = scmp.eq.s32.totalorder %s11, 3
    %p94 = por %p92, %p93
    %p95 = scmp.ne.s32.totalorder %s87, %s90
    %p96 = scmp.eq.s32.totalorder %s11, 0
    %p97 = por %p95, %p96
    %p98 = scmp.ne.s32.totalorder %s87, %s90
    %p99 = scmp.eq.s32.totalorder %s16, 3
    %p100 = por %p98, %p99
    %p101 = scmp.ne.s32.totalorder %s90, %s91
    %p102 = scmp.eq.s32.totalorder %s16, 0
    %p103 = por %p101, %p102
    %p104 = scmp.ne.s32.totalorder %s90, %s91
    %p105 = scmp.eq.s32.totalorder %s17, 3
    %p106 = por %p104, %p105
    %p108 = scmp.ne.s32.totalorder %s91, %s107
    %p109 = scmp.eq.s32.totalorder %s17, 0
    %p110 = por %p108, %p109
    %s111 = ssub.s32 %s18, %s30
    %p112 = scmp.eq.s32.totalorder %s111, 0
    %s114 = sadd.s32 %s113, 1
    %s115 = scalar_select %p112, %s113, %s114
    %p118 = pneg %p112
    %p119 = scmp.eq.s32.totalorder %s11, 3
    %p120 = por %p118, %p119
    %p121 = scmp.ne.s32.totalorder %s113, %s116
    %p122 = scmp.eq.s32.totalorder %s11, 0
    %p123 = por %p121, %p122
    %p124 = scmp.ne.s32.totalorder %s113, %s116
    %p125 = scmp.eq.s32.totalorder %s16, 3
    %p126 = por %p124, %p125
    %p127 = scmp.ne.s32.totalorder %s116, %s117
    %p128 = scmp.eq.s32.totalorder %s16, 0
    %p129 = por %p127, %p128
    %p130 = scmp.ne.s32.totalorder %s116, %s117
    %p131 = scmp.eq.s32.totalorder %s17, 3
    %p132 = por %p130, %p131
    %p134 = scmp.ne.s32.totalorder %s117, %s133
    %p135 = scmp.eq.s32.totalorder %s17, 0
    %p136 = por %p134, %p135
    %s137 = ssub.s32 %s18, %s30
    %p138 = scmp.eq.s32.totalorder %s137, 0
    %s140 = sadd.s32 %s139, 1
    %s141 = scalar_select %p138, %s139, %s140
    %p144 = pneg %p138
    %p145 = scmp.eq.s32.totalorder %s11, 3
    %p146 = por %p144, %p145
    %p147 = scmp.ne.s32.totalorder %s139, %s142
    %p148 = scmp.eq.s32.totalorder %s11, 0
    %p149 = por %p147, %p148
    %p150 = scmp.ne.s32.totalorder %s139, %s142
    %p151 = scmp.eq.s32.totalorder %s16, 3
    %p152 = por %p150, %p151
    %p153 = scmp.ne.s32.totalorder %s142, %s143
    %p154 = scmp.eq.s32.totalorder %s16, 0
    %p155 = por %p153, %p154
    %p156 = scmp.ne.s32.totalorder %s142, %s143
    %p157 = scmp.eq.s32.totalorder %s17, 3
    %p158 = por %p156, %p157
    %p160 = scmp.ne.s32.totalorder %s143, %s159
    %p161 = scmp.eq.s32.totalorder %s17, 0
    %p162 = por %p160, %p161
    %s163 = ssub.s32 %s18, %s30
    %s164 = ssub.s32 %s19, %s26
    %s165 = sor.u32 %s163, %s164
    %p166 = scmp.eq.s32.totalorder %s165, 0
    %s168 = sadd.s32 %s167, 1
    %s169 = scalar_select %p166, %s167, %s168
    %p172 = pneg %p166
    %p173 = scmp.eq.s32.totalorder %s11, 3
    %p174 = por %p172, %p173
    %p175 = scmp.ne.s32.totalorder %s167, %s170
    %p176 = scmp.eq.s32.totalorder %s11, 0
    %p177 = por %p175, %p176
    %p178 = scmp.ne.s32.totalorder %s167, %s170
    %p179 = scmp.eq.s32.totalorder %s16, 3
    %p180 = por %p178, %p179
    %p181 = scmp.ne.s32.totalorder %s170, %s171
    %p182 = scmp.eq.s32.totalorder %s16, 0
    %p183 = por %p181, %p182
    %p184 = scmp.ne.s32.totalorder %s170, %s171
    %p185 = scmp.eq.s32.totalorder %s17, 3
    %p186 = por %p184, %p185
    %p188 = scmp.ne.s32.totalorder %s171, %s187
    %p189 = scmp.eq.s32.totalorder %s17, 0
    %p190 = por %p188, %p189
    %p191 = scmp.le.s32.totalorder 1, %s11
    %p192 = scmp.lt.s32.totalorder %s11, 5
    %p193 = pnand %p191, %p192
    %p194 = pneg %p193
    // Predicated region
    $region9: #{cnn4b_forward.1} parent=5 // pred_check
      _
    $region10: #{cnn4b_forward.1} parent=5 // pred_check_branch
      %196 = sbr.rel (%p193) target = $region12
    $region11: #{cnn4b_forward.1} parent=5 // pred_region
      %s197 = ssub.s32 %s11, 1
    $region12: #{cnn4b_forward.1} parent=5 // pred_fallthru
      _
    %p198 = scmp.lt.s32.totalorder %s11, 4
    // Predicated region
    $region13: #{cnn4b_forward.1} parent=5 // pred_check
      %p199 = pneg %p198
    $region14: #{cnn4b_forward.1} parent=5 // pred_check_branch
      %201 = sbr.rel (%p199) target = $region16
    $region15: #{cnn4b_forward.1} parent=5 // pred_region
      // Predicated region
      $region17: #{cnn4b_forward.1} parent=15 // pred_check
        %p202 = pneg %p45
      $region18: #{cnn4b_forward.1} parent=15 // pred_check_branch
        %204 = sbr.rel (%p202) target = $region20
      $region19: #{cnn4b_forward.1} parent=15 // pred_region
        %p205 = scmp.lt.s32.totalorder %s18, 3
        %s206 = scalar_select %p205, %s18, 3
        %p207 = scmp.lt.s32.totalorder %s19, 0
        %s208 = scalar_select %p207, %s19, 0
        %s209 = smul.addr %s208, 4
        %s210 = smul.addr %s206, 4
        %s211 = sadd.s32 %s209, %s210
        %s212 = smul.addr %s211, 4
        %s213 = scalar_lea.vmem %s0, %s212
      $region20: #{cnn4b_forward.1} parent=15 // pred_fallthru
        _
      // Predicated region
      $region21: #{cnn4b_forward.1} parent=15 // pred_check
        %p214 = pneg %p71
      $region22: #{cnn4b_forward.1} parent=15 // pred_check_branch
        %216 = sbr.rel (%p214) target = $region24
      $region23: #{cnn4b_forward.1} parent=15 // pred_region
        %p217 = scmp.lt.s32.totalorder %s18, 3
        %s218 = scalar_select %p217, %s18, 3
        %s219 = smul.addr %s218, 512
        %s220 = smul.addr %s219, 4
        %s221 = scalar_lea.vmem %s1, %s220
      $region24: #{cnn4b_forward.1} parent=15 // pred_fallthru
        _
      // Predicated region
      $region25: #{cnn4b_forward.1} parent=15 // pred_check
        %p222 = pneg %p97
      $region26: #{cnn4b_forward.1} parent=15 // pred_check_branch
        %224 = sbr.rel (%p222) target = $region28
      $region27: #{cnn4b_forward.1} parent=15 // pred_region
        %p225 = scmp.lt.s32.totalorder %s18, 3
        %s226 = scalar_select %p225, %s18, 3
        %s227 = scalar_lea.vmem %s2, %s226
      $region28: #{cnn4b_forward.1} parent=15 // pred_fallthru
        _
      // Predicated region
      $region29: #{cnn4b_forward.1} parent=15 // pred_check
        %p228 = pneg %p123
      $region30: #{cnn4b_forward.1} parent=15 // pred_check_branch
        %230 = sbr.rel (%p228) target = $region32
      $region31: #{cnn4b_forward.1} parent=15 // pred_region
        %p231 = scmp.lt.s32.totalorder %s18, 3
        %s232 = scalar_select %p231, %s18, 3
        %s233 = smul.addr %s232, 8
        %s234 = smul.addr %s233, 4
        %s235 = scalar_lea.vmem %s3, %s234
      $region32: #{cnn4b_forward.1} parent=15 // pred_fallthru
        _
      // Predicated region
      $region33: #{cnn4b_forward.1} parent=15 // pred_check
        %p236 = pneg %p149
      $region34: #{cnn4b_forward.1} parent=15 // pred_check_branch
        %238 = sbr.rel (%p236) target = $region36
      $region35: #{cnn4b_forward.1} parent=15 // pred_region
        %p239 = scmp.lt.s32.totalorder %s18, 3
        %s240 = scalar_select %p239, %s18, 3
        %s241 = scalar_lea.vmem %s4, %s240
      $region36: #{cnn4b_forward.1} parent=15 // pred_fallthru
        _
    $region16: #{cnn4b_forward.1} parent=5 // pred_fallthru
      _
    %p242 = scmp.le.s32.totalorder 1, %s11
    %p243 = scmp.lt.s32.totalorder %s11, 5
    %p244 = pnand %p242, %p243
    %p245 = pneg %p244
    // Predicated region
    $region37: #{cnn4b_forward.1} parent=5 // pred_check
      _
    $region38: #{cnn4b_forward.1} parent=5 // pred_check_branch
      %247 = sbr.rel (%p244) target = $region40
    $region39: #{cnn4b_forward.1} parent=5 // pred_region
      %s248 = ssub.s32 %s11, 1
      %p249 = scmp.lt.s32.totalorder %s20, 3
      %s250 = scalar_select %p249, %s20, 3
      %p251 = scmp.lt.s32.totalorder %s21, 0
      %s252 = scalar_select %p251, %s21, 0
      %s253 = smul.addr %s252, 4
      %s254 = smul.addr %s250, 4
      %s255 = sadd.s32 %s253, %s254
      %s256 = smul.addr %s255, 4
      %s257 = scalar_lea.vmem %s0, %s256
      %p258 = pneg %p51
      %p259 = pneg %p48
      %p260 = scmp.lt.s32.totalorder %s20, 3
      %s261 = scalar_select %p260, %s20, 3
      %s262 = smul.addr %s261, 512
      %s263 = smul.addr %s262, 4
      %s264 = scalar_lea.vmem %s1, %s263
      %p265 = pneg %p77
      %p266 = pneg %p74
      %p267 = scmp.lt.s32.totalorder %s20, 3
      %s268 = scalar_select %p267, %s20, 3
      %s269 = scalar_lea.vmem %s2, %s268
      %p270 = pneg %p103
      %p271 = pneg %p100
      %p272 = scmp.lt.s32.totalorder %s20, 3
      %s273 = scalar_select %p272, %s20, 3
      %s274 = smul.addr %s273, 8
      %s275 = smul.addr %s274, 4
      %s276 = scalar_lea.vmem %s3, %s275
      %p277 = pneg %p129
      %p278 = pneg %p126
      %p279 = scmp.lt.s32.totalorder %s20, 3
      %s280 = scalar_select %p279, %s20, 3
      %s281 = scalar_lea.vmem %s4, %s280
      %p282 = pneg %p155
      %p283 = pneg %p152
      %p284 = pneg %p183
      %p285 = pneg %p180
      %p286 = scmp.lt.s32.totalorder %s20, 3
      %s287 = scalar_select %p286, %s20, 3
      %p288 = scmp.lt.s32.totalorder %s21, 0
      %s289 = scalar_select %p288, %s21, 0
      %s290 = sadd.s32 %s289, %s287
      %s291 = smul.addr %s290, 8
      %s292 = scalar_lea.vmem %s5, %s291
      %p293 = scmp.lt.s32.totalorder %s20, 3
      %s294 = scalar_select %p293, %s20, 3
      %p295 = scmp.lt.s32.totalorder %s21, 0
      %s296 = scalar_select %p295, %s21, 0
      %s297 = smul.addr %s296, 4
      %s298 = smul.addr %s294, 4
      %s299 = sadd.s32 %s297, %s298
      %s300 = smul.addr %s299, 4
      %s301 = scalar_lea.vmem %s0, %s300
      %p302 = scmp.lt.s32.totalorder %s20, 3
      %s303 = scalar_select %p302, %s20, 3
      %s304 = smul.addr %s303, 512
      %s305 = smul.addr %s304, 4
      %s306 = scalar_lea.vmem %s1, %s305
      %p307 = scmp.lt.s32.totalorder %s20, 3
      %s308 = scalar_select %p307, %s20, 3
      %s309 = scalar_lea.vmem %s2, %s308
      %p310 = scmp.lt.s32.totalorder %s20, 3
      %s311 = scalar_select %p310, %s20, 3
      %s312 = smul.addr %s311, 8
      %s313 = smul.addr %s312, 4
      %s314 = scalar_lea.vmem %s3, %s313
      %p315 = scmp.lt.s32.totalorder %s20, 3
      %s316 = scalar_select %p315, %s20, 3
      %s317 = scalar_lea.vmem %s4, %s316
      %p318 = scmp.lt.s32.totalorder %s20, 3
      %s319 = scalar_select %p318, %s20, 3
      %p320 = scmp.lt.s32.totalorder %s21, 0
      %s321 = scalar_select %p320, %s21, 0
      %s322 = sadd.s32 %s321, %s319
      %s323 = smul.addr %s322, 8
      %s324 = scalar_lea.vmem %s5, %s323
      %v326 = vld [vmem:[%s301] sm:$0xff]
      %v327 = vld [vmem:[%s301 + $0x8] sm:$0xff]
      %v328 = vld [vmem:[%s306] sm:$0xff]
      %v329 = vld [vmem:[%s306 + $0x8] sm:$0xff]
      %v330 = vld [vmem:[%s306 + $0x10] sm:$0xff]
      %v331 = vld [vmem:[%s306 + $0x18] sm:$0xff]
      %v332 = vld [vmem:[%s306 + $0x20] sm:$0xff]
      %v333 = vld [vmem:[%s306 + $0x28] sm:$0xff]
      %v334 = vld [vmem:[%s306 + $0x30] sm:$0xff]
      %v335 = vld [vmem:[%s306 + $0x38] sm:$0xff]
      %v336 = vld [vmem:[%s306 + $0x40] sm:$0xff]
      %v337 = vld [vmem:[%s306 + $0x48] sm:$0xff]
      %v338 = vld [vmem:[%s306 + $0x50] sm:$0xff]
      %v339 = vld [vmem:[%s306 + $0x58] sm:$0xff]
      %v340 = vld [vmem:[%s306 + $0x60] sm:$0xff]
      %v341 = vld [vmem:[%s306 + $0x68] sm:$0xff]
      %v342 = vld [vmem:[%s306 + $0x70] sm:$0xff]
      %v343 = vld [vmem:[%s306 + $0x78] sm:$0xff]
      %v344 = vld [vmem:[%s306 + $0x80] sm:$0xff]
      %v345 = vld [vmem:[%s306 + $0x88] sm:$0xff]
      %v346 = vld [vmem:[%s306 + $0x90] sm:$0xff]
      %v347 = vld [vmem:[%s306 + $0x98] sm:$0xff]
      %v348 = vld [vmem:[%s306 + $0xa0] sm:$0xff]
      %v349 = vld [vmem:[%s306 + $0xa8] sm:$0xff]
      %v350 = vld [vmem:[%s306 + $0xb0] sm:$0xff]
      %v351 = vld [vmem:[%s306 + $0xb8] sm:$0xff]
      %v352 = vld [vmem:[%s306 + $0xc0] sm:$0xff]
      %v353 = vld [vmem:[%s306 + $0xc8] sm:$0xff]
      %v354 = vld [vmem:[%s306 + $0xd0] sm:$0xff]
      %v355 = vld [vmem:[%s306 + $0xd8] sm:$0xff]
      %v356 = vld [vmem:[%s306 + $0xe0] sm:$0xff]
      %v357 = vld [vmem:[%s306 + $0xe8] sm:$0xff]
      %v358 = vld [vmem:[%s306 + $0xf0] sm:$0xff]
      %v359 = vld [vmem:[%s306 + $0xf8] sm:$0xff]
      %v360 = vld [vmem:[%s306 + $0x100] sm:$0xff]
      %v361 = vld [vmem:[%s306 + $0x108] sm:$0xff]
      %v362 = vld [vmem:[%s306 + $0x110] sm:$0xff]
      %v363 = vld [vmem:[%s306 + $0x118] sm:$0xff]
      %v364 = vld [vmem:[%s306 + $0x120] sm:$0xff]
      %v365 = vld [vmem:[%s306 + $0x128] sm:$0xff]
      %v366 = vld [vmem:[%s306 + $0x130] sm:$0xff]
      %v367 = vld [vmem:[%s306 + $0x138] sm:$0xff]
      %v368 = vld [vmem:[%s306 + $0x140] sm:$0xff]
      %v369 = vld [vmem:[%s306 + $0x148] sm:$0xff]
      %v370 = vld [vmem:[%s306 + $0x150] sm:$0xff]
      %v371 = vld [vmem:[%s306 + $0x158] sm:$0xff]
      %v372 = vld [vmem:[%s306 + $0x160] sm:$0xff]
      %v373 = vld [vmem:[%s306 + $0x168] sm:$0xff]
      %v374 = vld [vmem:[%s306 + $0x170] sm:$0xff]
      %v375 = vld [vmem:[%s306 + $0x178] sm:$0xff]
      %v376 = vld [vmem:[%s306 + $0x180] sm:$0xff]
      %v377 = vld [vmem:[%s306 + $0x188] sm:$0xff]
      %v378 = vld [vmem:[%s306 + $0x190] sm:$0xff]
      %v379 = vld [vmem:[%s306 + $0x198] sm:$0xff]
      %v380 = vld [vmem:[%s306 + $0x1a0] sm:$0xff]
      %v381 = vld [vmem:[%s306 + $0x1a8] sm:$0xff]
      %v382 = vld [vmem:[%s306 + $0x1b0] sm:$0xff]
      %v383 = vld [vmem:[%s306 + $0x1b8] sm:$0xff]
      %v384 = vld [vmem:[%s306 + $0x1c0] sm:$0xff]
      %v385 = vld [vmem:[%s306 + $0x1c8] sm:$0xff]
      %v386 = vld [vmem:[%s306 + $0x1d0] sm:$0xff]
      %v387 = vld [vmem:[%s306 + $0x1d8] sm:$0xff]
      %v388 = vld [vmem:[%s306 + $0x1e0] sm:$0xff]
      %v389 = vld [vmem:[%s306 + $0x1e8] sm:$0xff]
      %v390 = vld [vmem:[%s306 + $0x1f0] sm:$0xff]
      %v391 = vld [vmem:[%s306 + $0x1f8] sm:$0xff]
      %v392 = vld [vmem:[%s306 + $0x200] sm:$0xff]
      %v393 = vld [vmem:[%s306 + $0x208] sm:$0xff]
      %v394 = vld [vmem:[%s306 + $0x210] sm:$0xff]
      %v395 = vld [vmem:[%s306 + $0x218] sm:$0xff]
      %v396 = vld [vmem:[%s306 + $0x220] sm:$0xff]
      %v397 = vld [vmem:[%s306 + $0x228] sm:$0xff]
      %v398 = vld [vmem:[%s306 + $0x230] sm:$0xff]
      %v399 = vld [vmem:[%s306 + $0x238] sm:$0xff]
      %v400 = vld [vmem:[%s306 + $0x240] sm:$0xff]
      %v401 = vld [vmem:[%s306 + $0x248] sm:$0xff]
      %v402 = vld [vmem:[%s306 + $0x250] sm:$0xff]
      %v403 = vld [vmem:[%s306 + $0x258] sm:$0xff]
      %v404 = vld [vmem:[%s306 + $0x260] sm:$0xff]
      %v405 = vld [vmem:[%s306 + $0x268] sm:$0xff]
      %v406 = vld [vmem:[%s306 + $0x270] sm:$0xff]
      %v407 = vld [vmem:[%s306 + $0x278] sm:$0xff]
      %v408 = vld [vmem:[%s306 + $0x280] sm:$0xff]
      %v409 = vld [vmem:[%s306 + $0x288] sm:$0xff]
      %v410 = vld [vmem:[%s306 + $0x290] sm:$0xff]
      %v411 = vld [vmem:[%s306 + $0x298] sm:$0xff]
      %v412 = vld [vmem:[%s306 + $0x2a0] sm:$0xff]
      %v413 = vld [vmem:[%s306 + $0x2a8] sm:$0xff]
      %v414 = vld [vmem:[%s306 + $0x2b0] sm:$0xff]
      %v415 = vld [vmem:[%s306 + $0x2b8] sm:$0xff]
      %v416 = vld [vmem:[%s306 + $0x2c0] sm:$0xff]
      %v417 = vld [vmem:[%s306 + $0x2c8] sm:$0xff]
      %v418 = vld [vmem:[%s306 + $0x2d0] sm:$0xff]
      %v419 = vld [vmem:[%s306 + $0x2d8] sm:$0xff]
      %v420 = vld [vmem:[%s306 + $0x2e0] sm:$0xff]
      %v421 = vld [vmem:[%s306 + $0x2e8] sm:$0xff]
      %v422 = vld [vmem:[%s306 + $0x2f0] sm:$0xff]
      %v423 = vld [vmem:[%s306 + $0x2f8] sm:$0xff]
      %v424 = vld [vmem:[%s306 + $0x300] sm:$0xff]
      %v425 = vld [vmem:[%s306 + $0x308] sm:$0xff]
      %v426 = vld [vmem:[%s306 + $0x310] sm:$0xff]
      %v427 = vld [vmem:[%s306 + $0x318] sm:$0xff]
      %v428 = vld [vmem:[%s306 + $0x320] sm:$0xff]
      %v429 = vld [vmem:[%s306 + $0x328] sm:$0xff]
      %v430 = vld [vmem:[%s306 + $0x330] sm:$0xff]
      %v431 = vld [vmem:[%s306 + $0x338] sm:$0xff]
      %v432 = vld [vmem:[%s306 + $0x340] sm:$0xff]
      %v433 = vld [vmem:[%s306 + $0x348] sm:$0xff]
      %v434 = vld [vmem:[%s306 + $0x350] sm:$0xff]
      %v435 = vld [vmem:[%s306 + $0x358] sm:$0xff]
      %v436 = vld [vmem:[%s306 + $0x360] sm:$0xff]
      %v437 = vld [vmem:[%s306 + $0x368] sm:$0xff]
      %v438 = vld [vmem:[%s306 + $0x370] sm:$0xff]
      %v439 = vld [vmem:[%s306 + $0x378] sm:$0xff]
      %v440 = vld [vmem:[%s306 + $0x380] sm:$0xff]
      %v441 = vld [vmem:[%s306 + $0x388] sm:$0xff]
      %v442 = vld [vmem:[%s306 + $0x390] sm:$0xff]
      %v443 = vld [vmem:[%s306 + $0x398] sm:$0xff]
      %v444 = vld [vmem:[%s306 + $0x3a0] sm:$0xff]
      %v445 = vld [vmem:[%s306 + $0x3a8] sm:$0xff]
      %v446 = vld [vmem:[%s306 + $0x3b0] sm:$0xff]
      %v447 = vld [vmem:[%s306 + $0x3b8] sm:$0xff]
      %v448 = vld [vmem:[%s306 + $0x3c0] sm:$0xff]
      %v449 = vld [vmem:[%s306 + $0x3c8] sm:$0xff]
      %v450 = vld [vmem:[%s306 + $0x3d0] sm:$0xff]
      %v451 = vld [vmem:[%s306 + $0x3d8] sm:$0xff]
      %v452 = vld [vmem:[%s306 + $0x3e0] sm:$0xff]
      %v453 = vld [vmem:[%s306 + $0x3e8] sm:$0xff]
      %v454 = vld [vmem:[%s306 + $0x3f0] sm:$0xff]
      %v455 = vld [vmem:[%s306 + $0x3f8] sm:$0xff]
      %v456 = vld [vmem:[%s306 + $0x400] sm:$0xff]
      %v457 = vld [vmem:[%s306 + $0x408] sm:$0xff]
      %v458 = vld [vmem:[%s306 + $0x410] sm:$0xff]
      %v459 = vld [vmem:[%s306 + $0x418] sm:$0xff]
      %v460 = vld [vmem:[%s306 + $0x420] sm:$0xff]
      %v461 = vld [vmem:[%s306 + $0x428] sm:$0xff]
      %v462 = vld [vmem:[%s306 + $0x430] sm:$0xff]
      %v463 = vld [vmem:[%s306 + $0x438] sm:$0xff]
      %v464 = vld [vmem:[%s306 + $0x440] sm:$0xff]
      %v465 = vld [vmem:[%s306 + $0x448] sm:$0xff]
      %v466 = vld [vmem:[%s306 + $0x450] sm:$0xff]
      %v467 = vld [vmem:[%s306 + $0x458] sm:$0xff]
      %v468 = vld [vmem:[%s306 + $0x460] sm:$0xff]
      %v469 = vld [vmem:[%s306 + $0x468] sm:$0xff]
      %v470 = vld [vmem:[%s306 + $0x470] sm:$0xff]
      %v471 = vld [vmem:[%s306 + $0x478] sm:$0xff]
      %v472 = vld [vmem:[%s306 + $0x480] sm:$0xff]
      %v473 = vld [vmem:[%s306 + $0x488] sm:$0xff]
      %v474 = vld [vmem:[%s306 + $0x490] sm:$0xff]
      %v475 = vld [vmem:[%s306 + $0x498] sm:$0xff]
      %v476 = vld [vmem:[%s306 + $0x4a0] sm:$0xff]
      %v477 = vld [vmem:[%s306 + $0x4a8] sm:$0xff]
      %v478 = vld [vmem:[%s306 + $0x4b0] sm:$0xff]
      %v479 = vld [vmem:[%s306 + $0x4b8] sm:$0xff]
      %v480 = vld [vmem:[%s306 + $0x4c0] sm:$0xff]
      %v481 = vld [vmem:[%s306 + $0x4c8] sm:$0xff]
      %v482 = vld [vmem:[%s306 + $0x4d0] sm:$0xff]
      %v483 = vld [vmem:[%s306 + $0x4d8] sm:$0xff]
      %v484 = vld [vmem:[%s306 + $0x4e0] sm:$0xff]
      %v485 = vld [vmem:[%s306 + $0x4e8] sm:$0xff]
      %v486 = vld [vmem:[%s306 + $0x4f0] sm:$0xff]
      %v487 = vld [vmem:[%s306 + $0x4f8] sm:$0xff]
      %v488 = vld [vmem:[%s306 + $0x500] sm:$0xff]
      %v489 = vld [vmem:[%s306 + $0x508] sm:$0xff]
      %v490 = vld [vmem:[%s306 + $0x510] sm:$0xff]
      %v491 = vld [vmem:[%s306 + $0x518] sm:$0xff]
      %v492 = vld [vmem:[%s306 + $0x520] sm:$0xff]
      %v493 = vld [vmem:[%s306 + $0x528] sm:$0xff]
      %v494 = vld [vmem:[%s306 + $0x530] sm:$0xff]
      %v495 = vld [vmem:[%s306 + $0x538] sm:$0xff]
      %v496 = vld [vmem:[%s306 + $0x540] sm:$0xff]
      %v497 = vld [vmem:[%s306 + $0x548] sm:$0xff]
      %v498 = vld [vmem:[%s306 + $0x550] sm:$0xff]
      %v499 = vld [vmem:[%s306 + $0x558] sm:$0xff]
      %v500 = vld [vmem:[%s306 + $0x560] sm:$0xff]
      %v501 = vld [vmem:[%s306 + $0x568] sm:$0xff]
      %v502 = vld [vmem:[%s306 + $0x570] sm:$0xff]
      %v503 = vld [vmem:[%s306 + $0x578] sm:$0xff]
      %v504 = vld [vmem:[%s306 + $0x580] sm:$0xff]
      %v505 = vld [vmem:[%s306 + $0x588] sm:$0xff]
      %v506 = vld [vmem:[%s306 + $0x590] sm:$0xff]
      %v507 = vld [vmem:[%s306 + $0x598] sm:$0xff]
      %v508 = vld [vmem:[%s306 + $0x5a0] sm:$0xff]
      %v509 = vld [vmem:[%s306 + $0x5a8] sm:$0xff]
      %v510 = vld [vmem:[%s306 + $0x5b0] sm:$0xff]
      %v511 = vld [vmem:[%s306 + $0x5b8] sm:$0xff]
      %v512 = vld [vmem:[%s306 + $0x5c0] sm:$0xff]
      %v513 = vld [vmem:[%s306 + $0x5c8] sm:$0xff]
      %v514 = vld [vmem:[%s306 + $0x5d0] sm:$0xff]
      %v515 = vld [vmem:[%s306 + $0x5d8] sm:$0xff]
      %v516 = vld [vmem:[%s306 + $0x5e0] sm:$0xff]
      %v517 = vld [vmem:[%s306 + $0x5e8] sm:$0xff]
      %v518 = vld [vmem:[%s306 + $0x5f0] sm:$0xff]
      %v519 = vld [vmem:[%s306 + $0x5f8] sm:$0xff]
      %v520 = vld [vmem:[%s306 + $0x600] sm:$0xff]
      %v521 = vld [vmem:[%s306 + $0x608] sm:$0xff]
      %v522 = vld [vmem:[%s306 + $0x610] sm:$0xff]
      %v523 = vld [vmem:[%s306 + $0x618] sm:$0xff]
      %v524 = vld [vmem:[%s306 + $0x620] sm:$0xff]
      %v525 = vld [vmem:[%s306 + $0x628] sm:$0xff]
      %v526 = vld [vmem:[%s306 + $0x630] sm:$0xff]
      %v527 = vld [vmem:[%s306 + $0x638] sm:$0xff]
      %v528 = vld [vmem:[%s306 + $0x640] sm:$0xff]
      %v529 = vld [vmem:[%s306 + $0x648] sm:$0xff]
      %v530 = vld [vmem:[%s306 + $0x650] sm:$0xff]
      %v531 = vld [vmem:[%s306 + $0x658] sm:$0xff]
      %v532 = vld [vmem:[%s306 + $0x660] sm:$0xff]
      %v533 = vld [vmem:[%s306 + $0x668] sm:$0xff]
      %v534 = vld [vmem:[%s306 + $0x670] sm:$0xff]
      %v535 = vld [vmem:[%s306 + $0x678] sm:$0xff]
      %v536 = vld [vmem:[%s306 + $0x680] sm:$0xff]
      %v537 = vld [vmem:[%s306 + $0x688] sm:$0xff]
      %v538 = vld [vmem:[%s306 + $0x690] sm:$0xff]
      %v539 = vld [vmem:[%s306 + $0x698] sm:$0xff]
      %v540 = vld [vmem:[%s306 + $0x6a0] sm:$0xff]
      %v541 = vld [vmem:[%s306 + $0x6a8] sm:$0xff]
      %v542 = vld [vmem:[%s306 + $0x6b0] sm:$0xff]
      %v543 = vld [vmem:[%s306 + $0x6b8] sm:$0xff]
      %v544 = vld [vmem:[%s306 + $0x6c0] sm:$0xff]
      %v545 = vld [vmem:[%s306 + $0x6c8] sm:$0xff]
      %v546 = vld [vmem:[%s306 + $0x6d0] sm:$0xff]
      %v547 = vld [vmem:[%s306 + $0x6d8] sm:$0xff]
      %v548 = vld [vmem:[%s306 + $0x6e0] sm:$0xff]
      %v549 = vld [vmem:[%s306 + $0x6e8] sm:$0xff]
      %v550 = vld [vmem:[%s306 + $0x6f0] sm:$0xff]
      %v551 = vld [vmem:[%s306 + $0x6f8] sm:$0xff]
      %v552 = vld [vmem:[%s306 + $0x700] sm:$0xff]
      %v553 = vld [vmem:[%s306 + $0x708] sm:$0xff]
      %v554 = vld [vmem:[%s306 + $0x710] sm:$0xff]
      %v555 = vld [vmem:[%s306 + $0x718] sm:$0xff]
      %v556 = vld [vmem:[%s306 + $0x720] sm:$0xff]
      %v557 = vld [vmem:[%s306 + $0x728] sm:$0xff]
      %v558 = vld [vmem:[%s306 + $0x730] sm:$0xff]
      %v559 = vld [vmem:[%s306 + $0x738] sm:$0xff]
      %v560 = vld [vmem:[%s306 + $0x740] sm:$0xff]
      %v561 = vld [vmem:[%s306 + $0x748] sm:$0xff]
      %v562 = vld [vmem:[%s306 + $0x750] sm:$0xff]
      %v563 = vld [vmem:[%s306 + $0x758] sm:$0xff]
      %v564 = vld [vmem:[%s306 + $0x760] sm:$0xff]
      %v565 = vld [vmem:[%s306 + $0x768] sm:$0xff]
      %v566 = vld [vmem:[%s306 + $0x770] sm:$0xff]
      %v567 = vld [vmem:[%s306 + $0x778] sm:$0xff]
      %v568 = vld [vmem:[%s306 + $0x780] sm:$0xff]
      %v569 = vld [vmem:[%s306 + $0x788] sm:$0xff]
      %v570 = vld [vmem:[%s306 + $0x790] sm:$0xff]
      %v571 = vld [vmem:[%s306 + $0x798] sm:$0xff]
      %v572 = vld [vmem:[%s306 + $0x7a0] sm:$0xff]
      %v573 = vld [vmem:[%s306 + $0x7a8] sm:$0xff]
      %v574 = vld [vmem:[%s306 + $0x7b0] sm:$0xff]
      %v575 = vld [vmem:[%s306 + $0x7b8] sm:$0xff]
      %v576 = vld [vmem:[%s306 + $0x7c0] sm:$0xff]
      %v577 = vld [vmem:[%s306 + $0x7c8] sm:$0xff]
      %v578 = vld [vmem:[%s306 + $0x7d0] sm:$0xff]
      %v579 = vld [vmem:[%s306 + $0x7d8] sm:$0xff]
      %v580 = vld [vmem:[%s306 + $0x7e0] sm:$0xff]
      %v581 = vld [vmem:[%s306 + $0x7e8] sm:$0xff]
      %v582 = vld [vmem:[%s306 + $0x7f0] sm:$0xff]
      %v583 = vld [vmem:[%s306 + $0x7f8] sm:$0xff]
      %v586 = vunpack.c.l.b16 %v326
      %v587 = vunpack.c.h.b16 %v326
      %v588 = vunpack.c.l.b16 %v327
      %v589 = vunpack.c.h.b16 %v327
      %v590 = vpack.c.b16 %v586, %v586
      %v591 = vpack.c.b16 %v587, %v587
      %v592 = vpack.c.b16 %v588, %v588
      %v593 = vpack.c.b16 %v589, %v589
      %v854 = vunpack.c.l.b16 %v328
      %v855 = vunpack.c.h.b16 %v328
      %v856 = vunpack.c.l.b16 %v329
      %v857 = vunpack.c.h.b16 %v329
      %v858 = vunpack.c.l.b16 %v330
      %v859 = vunpack.c.h.b16 %v330
      %v860 = vunpack.c.l.b16 %v331
      %v861 = vunpack.c.h.b16 %v331
      %v862 = vunpack.c.l.b16 %v332
      %v863 = vunpack.c.h.b16 %v332
      %v864 = vunpack.c.l.b16 %v333
      %v865 = vunpack.c.h.b16 %v333
      %v866 = vunpack.c.l.b16 %v334
      %v867 = vunpack.c.h.b16 %v334
      %v868 = vunpack.c.l.b16 %v335
      %v869 = vunpack.c.h.b16 %v335
      %v870 = vunpack.c.l.b16 %v336
      %v871 = vunpack.c.h.b16 %v336
      %v872 = vunpack.c.l.b16 %v337
      %v873 = vunpack.c.h.b16 %v337
      %v874 = vunpack.c.l.b16 %v338
      %v875 = vunpack.c.h.b16 %v338
      %v876 = vunpack.c.l.b16 %v339
      %v877 = vunpack.c.h.b16 %v339
      %v878 = vunpack.c.l.b16 %v340
      %v879 = vunpack.c.h.b16 %v340
      %v880 = vunpack.c.l.b16 %v341
      %v881 = vunpack.c.h.b16 %v341
      %v882 = vunpack.c.l.b16 %v342
      %v883 = vunpack.c.h.b16 %v342
      %v884 = vunpack.c.l.b16 %v343
      %v885 = vunpack.c.h.b16 %v343
      %v886 = vunpack.c.l.b16 %v344
      %v887 = vunpack.c.h.b16 %v344
      %v888 = vunpack.c.l.b16 %v345
      %v889 = vunpack.c.h.b16 %v345
      %v890 = vunpack.c.l.b16 %v346
      %v891 = vunpack.c.h.b16 %v346
      %v892 = vunpack.c.l.b16 %v347
      %v893 = vunpack.c.h.b16 %v347
      %v894 = vunpack.c.l.b16 %v348
      %v895 = vunpack.c.h.b16 %v348
      %v896 = vunpack.c.l.b16 %v349
      %v897 = vunpack.c.h.b16 %v349
      %v898 = vunpack.c.l.b16 %v350
      %v899 = vunpack.c.h.b16 %v350
      %v900 = vunpack.c.l.b16 %v351
      %v901 = vunpack.c.h.b16 %v351
      %v902 = vunpack.c.l.b16 %v352
      %v903 = vunpack.c.h.b16 %v352
      %v904 = vunpack.c.l.b16 %v353
      %v905 = vunpack.c.h.b16 %v353
      %v906 = vunpack.c.l.b16 %v354
      %v907 = vunpack.c.h.b16 %v354
      %v908 = vunpack.c.l.b16 %v355
      %v909 = vunpack.c.h.b16 %v355
      %v910 = vunpack.c.l.b16 %v356
      %v911 = vunpack.c.h.b16 %v356
      %v912 = vunpack.c.l.b16 %v357
      %v913 = vunpack.c.h.b16 %v357
      %v914 = vunpack.c.l.b16 %v358
      %v915 = vunpack.c.h.b16 %v358
      %v916 = vunpack.c.l.b16 %v359
      %v917 = vunpack.c.h.b16 %v359
      %v918 = vunpack.c.l.b16 %v360
      %v919 = vunpack.c.h.b16 %v360
      %v920 = vunpack.c.l.b16 %v361
      %v921 = vunpack.c.h.b16 %v361
      %v922 = vunpack.c.l.b16 %v362
      %v923 = vunpack.c.h.b16 %v362
      %v924 = vunpack.c.l.b16 %v363
      %v925 = vunpack.c.h.b16 %v363
      %v926 = vunpack.c.l.b16 %v364
      %v927 = vunpack.c.h.b16 %v364
      %v928 = vunpack.c.l.b16 %v365
      %v929 = vunpack.c.h.b16 %v365
      %v930 = vunpack.c.l.b16 %v366
      %v931 = vunpack.c.h.b16 %v366
      %v932 = vunpack.c.l.b16 %v367
      %v933 = vunpack.c.h.b16 %v367
      %v934 = vunpack.c.l.b16 %v368
      %v935 = vunpack.c.h.b16 %v368
      %v936 = vunpack.c.l.b16 %v369
      %v937 = vunpack.c.h.b16 %v369
      %v938 = vunpack.c.l.b16 %v370
      %v939 = vunpack.c.h.b16 %v370
      %v940 = vunpack.c.l.b16 %v371
      %v941 = vunpack.c.h.b16 %v371
      %v942 = vunpack.c.l.b16 %v372
      %v943 = vunpack.c.h.b16 %v372
      %v944 = vunpack.c.l.b16 %v373
      %v945 = vunpack.c.h.b16 %v373
      %v946 = vunpack.c.l.b16 %v374
      %v947 = vunpack.c.h.b16 %v374
      %v948 = vunpack.c.l.b16 %v375
      %v949 = vunpack.c.h.b16 %v375
      %v950 = vunpack.c.l.b16 %v376
      %v951 = vunpack.c.h.b16 %v376
      %v952 = vunpack.c.l.b16 %v377
      %v953 = vunpack.c.h.b16 %v377
      %v954 = vunpack.c.l.b16 %v378
      %v955 = vunpack.c.h.b16 %v378
      %v956 = vunpack.c.l.b16 %v379
      %v957 = vunpack.c.h.b16 %v379
      %v958 = vunpack.c.l.b16 %v380
      %v959 = vunpack.c.h.b16 %v380
      %v960 = vunpack.c.l.b16 %v381
      %v961 = vunpack.c.h.b16 %v381
      %v962 = vunpack.c.l.b16 %v382
      %v963 = vunpack.c.h.b16 %v382
      %v964 = vunpack.c.l.b16 %v383
      %v965 = vunpack.c.h.b16 %v383
      %v966 = vunpack.c.l.b16 %v384
      %v967 = vunpack.c.h.b16 %v384
      %v968 = vunpack.c.l.b16 %v385
      %v969 = vunpack.c.h.b16 %v385
      %v970 = vunpack.c.l.b16 %v386
      %v971 = vunpack.c.h.b16 %v386
      %v972 = vunpack.c.l.b16 %v387
      %v973 = vunpack.c.h.b16 %v387
      %v974 = vunpack.c.l.b16 %v388
      %v975 = vunpack.c.h.b16 %v388
      %v976 = vunpack.c.l.b16 %v389
      %v977 = vunpack.c.h.b16 %v389
      %v978 = vunpack.c.l.b16 %v390
      %v979 = vunpack.c.h.b16 %v390
      %v980 = vunpack.c.l.b16 %v391
      %v981 = vunpack.c.h.b16 %v391
      %v982 = vunpack.c.l.b16 %v392
      %v983 = vunpack.c.h.b16 %v392
      %v984 = vunpack.c.l.b16 %v393
      %v985 = vunpack.c.h.b16 %v393
      %v986 = vunpack.c.l.b16 %v394
      %v987 = vunpack.c.h.b16 %v394
      %v988 = vunpack.c.l.b16 %v395
      %v989 = vunpack.c.h.b16 %v395
      %v990 = vunpack.c.l.b16 %v396
      %v991 = vunpack.c.h.b16 %v396
      %v992 = vunpack.c.l.b16 %v397
      %v993 = vunpack.c.h.b16 %v397
      %v994 = vunpack.c.l.b16 %v398
      %v995 = vunpack.c.h.b16 %v398
      %v996 = vunpack.c.l.b16 %v399
      %v997 = vunpack.c.h.b16 %v399
      %v998 = vunpack.c.l.b16 %v400
      %v999 = vunpack.c.h.b16 %v400
      %v1000 = vunpack.c.l.b16 %v401
      %v1001 = vunpack.c.h.b16 %v401
      %v1002 = vunpack.c.l.b16 %v402
      %v1003 = vunpack.c.h.b16 %v402
      %v1004 = vunpack.c.l.b16 %v403
      %v1005 = vunpack.c.h.b16 %v403
      %v1006 = vunpack.c.l.b16 %v404
      %v1007 = vunpack.c.h.b16 %v404
      %v1008 = vunpack.c.l.b16 %v405
      %v1009 = vunpack.c.h.b16 %v405
      %v1010 = vunpack.c.l.b16 %v406
      %v1011 = vunpack.c.h.b16 %v406
      %v1012 = vunpack.c.l.b16 %v407
      %v1013 = vunpack.c.h.b16 %v407
      %v1014 = vunpack.c.l.b16 %v408
      %v1015 = vunpack.c.h.b16 %v408
      %v1016 = vunpack.c.l.b16 %v409
      %v1017 = vunpack.c.h.b16 %v409
      %v1018 = vunpack.c.l.b16 %v410
      %v1019 = vunpack.c.h.b16 %v410
      %v1020 = vunpack.c.l.b16 %v411
      %v1021 = vunpack.c.h.b16 %v411
      %v1022 = vunpack.c.l.b16 %v412
      %v1023 = vunpack.c.h.b16 %v412
      %v1024 = vunpack.c.l.b16 %v413
      %v1025 = vunpack.c.h.b16 %v413
      %v1026 = vunpack.c.l.b16 %v414
      %v1027 = vunpack.c.h.b16 %v414
      %v1028 = vunpack.c.l.b16 %v415
      %v1029 = vunpack.c.h.b16 %v415
      %v1030 = vunpack.c.l.b16 %v416
      %v1031 = vunpack.c.h.b16 %v416
      %v1032 = vunpack.c.l.b16 %v417
      %v1033 = vunpack.c.h.b16 %v417
      %v1034 = vunpack.c.l.b16 %v418
      %v1035 = vunpack.c.h.b16 %v418
      %v1036 = vunpack.c.l.b16 %v419
      %v1037 = vunpack.c.h.b16 %v419
      %v1038 = vunpack.c.l.b16 %v420
      %v1039 = vunpack.c.h.b16 %v420
      %v1040 = vunpack.c.l.b16 %v421
      %v1041 = vunpack.c.h.b16 %v421
      %v1042 = vunpack.c.l.b16 %v422
      %v1043 = vunpack.c.h.b16 %v422
      %v1044 = vunpack.c.l.b16 %v423
      %v1045 = vunpack.c.h.b16 %v423
      %v1046 = vunpack.c.l.b16 %v424
      %v1047 = vunpack.c.h.b16 %v424
      %v1048 = vunpack.c.l.b16 %v425
      %v1049 = vunpack.c.h.b16 %v425
      %v1050 = vunpack.c.l.b16 %v426
      %v1051 = vunpack.c.h.b16 %v426
      %v1052 = vunpack.c.l.b16 %v427
      %v1053 = vunpack.c.h.b16 %v427
      %v1054 = vunpack.c.l.b16 %v428
      %v1055 = vunpack.c.h.b16 %v428
      %v1056 = vunpack.c.l.b16 %v429
      %v1057 = vunpack.c.h.b16 %v429
      %v1058 = vunpack.c.l.b16 %v430
      %v1059 = vunpack.c.h.b16 %v430
      %v1060 = vunpack.c.l.b16 %v431
      %v1061 = vunpack.c.h.b16 %v431
      %v1062 = vunpack.c.l.b16 %v432
      %v1063 = vunpack.c.h.b16 %v432
      %v1064 = vunpack.c.l.b16 %v433
      %v1065 = vunpack.c.h.b16 %v433
      %v1066 = vunpack.c.l.b16 %v434
      %v1067 = vunpack.c.h.b16 %v434
      %v1068 = vunpack.c.l.b16 %v435
      %v1069 = vunpack.c.h.b16 %v435
      %v1070 = vunpack.c.l.b16 %v436
      %v1071 = vunpack.c.h.b16 %v436
      %v1072 = vunpack.c.l.b16 %v437
      %v1073 = vunpack.c.h.b16 %v437
      %v1074 = vunpack.c.l.b16 %v438
      %v1075 = vunpack.c.h.b16 %v438
      %v1076 = vunpack.c.l.b16 %v439
      %v1077 = vunpack.c.h.b16 %v439
      %v1078 = vunpack.c.l.b16 %v440
      %v1079 = vunpack.c.h.b16 %v440
      %v1080 = vunpack.c.l.b16 %v441
      %v1081 = vunpack.c.h.b16 %v441
      %v1082 = vunpack.c.l.b16 %v442
      %v1083 = vunpack.c.h.b16 %v442
      %v1084 = vunpack.c.l.b16 %v443
      %v1085 = vunpack.c.h.b16 %v443
      %v1086 = vunpack.c.l.b16 %v444
      %v1087 = vunpack.c.h.b16 %v444
      %v1088 = vunpack.c.l.b16 %v445
      %v1089 = vunpack.c.h.b16 %v445
      %v1090 = vunpack.c.l.b16 %v446
      %v1091 = vunpack.c.h.b16 %v446
      %v1092 = vunpack.c.l.b16 %v447
      %v1093 = vunpack.c.h.b16 %v447
      %v1094 = vunpack.c.l.b16 %v448
      %v1095 = vunpack.c.h.b16 %v448
      %v1096 = vunpack.c.l.b16 %v449
      %v1097 = vunpack.c.h.b16 %v449
      %v1098 = vunpack.c.l.b16 %v450
      %v1099 = vunpack.c.h.b16 %v450
      %v1100 = vunpack.c.l.b16 %v451
      %v1101 = vunpack.c.h.b16 %v451
      %v1102 = vunpack.c.l.b16 %v452
      %v1103 = vunpack.c.h.b16 %v452
      %v1104 = vunpack.c.l.b16 %v453
      %v1105 = vunpack.c.h.b16 %v453
      %v1106 = vunpack.c.l.b16 %v454
      %v1107 = vunpack.c.h.b16 %v454
      %v1108 = vunpack.c.l.b16 %v455
      %v1109 = vunpack.c.h.b16 %v455
      %v1110 = vunpack.c.l.b16 %v456
      %v1111 = vunpack.c.h.b16 %v456
      %v1112 = vunpack.c.l.b16 %v457
      %v1113 = vunpack.c.h.b16 %v457
      %v1114 = vunpack.c.l.b16 %v458
      %v1115 = vunpack.c.h.b16 %v458
      %v1116 = vunpack.c.l.b16 %v459
      %v1117 = vunpack.c.h.b16 %v459
      %v1118 = vunpack.c.l.b16 %v460
      %v1119 = vunpack.c.h.b16 %v460
      %v1120 = vunpack.c.l.b16 %v461
      %v1121 = vunpack.c.h.b16 %v461
      %v1122 = vunpack.c.l.b16 %v462
      %v1123 = vunpack.c.h.b16 %v462
      %v1124 = vunpack.c.l.b16 %v463
      %v1125 = vunpack.c.h.b16 %v463
      %v1126 = vunpack.c.l.b16 %v464
      %v1127 = vunpack.c.h.b16 %v464
      %v1128 = vunpack.c.l.b16 %v465
      %v1129 = vunpack.c.h.b16 %v465
      %v1130 = vunpack.c.l.b16 %v466
      %v1131 = vunpack.c.h.b16 %v466
      %v1132 = vunpack.c.l.b16 %v467
      %v1133 = vunpack.c.h.b16 %v467
      %v1134 = vunpack.c.l.b16 %v468
      %v1135 = vunpack.c.h.b16 %v468
      %v1136 = vunpack.c.l.b16 %v469
      %v1137 = vunpack.c.h.b16 %v469
      %v1138 = vunpack.c.l.b16 %v470
      %v1139 = vunpack.c.h.b16 %v470
      %v1140 = vunpack.c.l.b16 %v471
      %v1141 = vunpack.c.h.b16 %v471
      %v1142 = vunpack.c.l.b16 %v472
      %v1143 = vunpack.c.h.b16 %v472
      %v1144 = vunpack.c.l.b16 %v473
      %v1145 = vunpack.c.h.b16 %v473
      %v1146 = vunpack.c.l.b16 %v474
      %v1147 = vunpack.c.h.b16 %v474
      %v1148 = vunpack.c.l.b16 %v475
      %v1149 = vunpack.c.h.b16 %v475
      %v1150 = vunpack.c.l.b16 %v476
      %v1151 = vunpack.c.h.b16 %v476
      %v1152 = vunpack.c.l.b16 %v477
      %v1153 = vunpack.c.h.b16 %v477
      %v1154 = vunpack.c.l.b16 %v478
      %v1155 = vunpack.c.h.b16 %v478
      %v1156 = vunpack.c.l.b16 %v479
      %v1157 = vunpack.c.h.b16 %v479
      %v1158 = vunpack.c.l.b16 %v480
      %v1159 = vunpack.c.h.b16 %v480
      %v1160 = vunpack.c.l.b16 %v481
      %v1161 = vunpack.c.h.b16 %v481
      %v1162 = vunpack.c.l.b16 %v482
      %v1163 = vunpack.c.h.b16 %v482
      %v1164 = vunpack.c.l.b16 %v483
      %v1165 = vunpack.c.h.b16 %v483
      %v1166 = vunpack.c.l.b16 %v484
      %v1167 = vunpack.c.h.b16 %v484
      %v1168 = vunpack.c.l.b16 %v485
      %v1169 = vunpack.c.h.b16 %v485
      %v1170 = vunpack.c.l.b16 %v486
      %v1171 = vunpack.c.h.b16 %v486
      %v1172 = vunpack.c.l.b16 %v487
      %v1173 = vunpack.c.h.b16 %v487
      %v1174 = vunpack.c.l.b16 %v488
      %v1175 = vunpack.c.h.b16 %v488
      %v1176 = vunpack.c.l.b16 %v489
      %v1177 = vunpack.c.h.b16 %v489
      %v1178 = vunpack.c.l.b16 %v490
      %v1179 = vunpack.c.h.b16 %v490
      %v1180 = vunpack.c.l.b16 %v491
      %v1181 = vunpack.c.h.b16 %v491
      %v1182 = vunpack.c.l.b16 %v492
      %v1183 = vunpack.c.h.b16 %v492
      %v1184 = vunpack.c.l.b16 %v493
      %v1185 = vunpack.c.h.b16 %v493
      %v1186 = vunpack.c.l.b16 %v494
      %v1187 = vunpack.c.h.b16 %v494
      %v1188 = vunpack.c.l.b16 %v495
      %v1189 = vunpack.c.h.b16 %v495
      %v1190 = vunpack.c.l.b16 %v496
      %v1191 = vunpack.c.h.b16 %v496
      %v1192 = vunpack.c.l.b16 %v497
      %v1193 = vunpack.c.h.b16 %v497
      %v1194 = vunpack.c.l.b16 %v498
      %v1195 = vunpack.c.h.b16 %v498
      %v1196 = vunpack.c.l.b16 %v499
      %v1197 = vunpack.c.h.b16 %v499
      %v1198 = vunpack.c.l.b16 %v500
      %v1199 = vunpack.c.h.b16 %v500
      %v1200 = vunpack.c.l.b16 %v501
      %v1201 = vunpack.c.h.b16 %v501
      %v1202 = vunpack.c.l.b16 %v502
      %v1203 = vunpack.c.h.b16 %v502
      %v1204 = vunpack.c.l.b16 %v503
      %v1205 = vunpack.c.h.b16 %v503
      %v1206 = vunpack.c.l.b16 %v504
      %v1207 = vunpack.c.h.b16 %v504
      %v1208 = vunpack.c.l.b16 %v505
      %v1209 = vunpack.c.h.b16 %v505
      %v1210 = vunpack.c.l.b16 %v506
      %v1211 = vunpack.c.h.b16 %v506
      %v1212 = vunpack.c.l.b16 %v507
      %v1213 = vunpack.c.h.b16 %v507
      %v1214 = vunpack.c.l.b16 %v508
      %v1215 = vunpack.c.h.b16 %v508
      %v1216 = vunpack.c.l.b16 %v509
      %v1217 = vunpack.c.h.b16 %v509
      %v1218 = vunpack.c.l.b16 %v510
      %v1219 = vunpack.c.h.b16 %v510
      %v1220 = vunpack.c.l.b16 %v511
      %v1221 = vunpack.c.h.b16 %v511
      %v1222 = vunpack.c.l.b16 %v512
      %v1223 = vunpack.c.h.b16 %v512
      %v1224 = vunpack.c.l.b16 %v513
      %v1225 = vunpack.c.h.b16 %v513
      %v1226 = vunpack.c.l.b16 %v514
      %v1227 = vunpack.c.h.b16 %v514
      %v1228 = vunpack.c.l.b16 %v515
      %v1229 = vunpack.c.h.b16 %v515
      %v1230 = vunpack.c.l.b16 %v516
      %v1231 = vunpack.c.h.b16 %v516
      %v1232 = vunpack.c.l.b16 %v517
      %v1233 = vunpack.c.h.b16 %v517
      %v1234 = vunpack.c.l.b16 %v518
      %v1235 = vunpack.c.h.b16 %v518
      %v1236 = vunpack.c.l.b16 %v519
      %v1237 = vunpack.c.h.b16 %v519
      %v1238 = vunpack.c.l.b16 %v520
      %v1239 = vunpack.c.h.b16 %v520
      %v1240 = vunpack.c.l.b16 %v521
      %v1241 = vunpack.c.h.b16 %v521
      %v1242 = vunpack.c.l.b16 %v522
      %v1243 = vunpack.c.h.b16 %v522
      %v1244 = vunpack.c.l.b16 %v523
      %v1245 = vunpack.c.h.b16 %v523
      %v1246 = vunpack.c.l.b16 %v524
      %v1247 = vunpack.c.h.b16 %v524
      %v1248 = vunpack.c.l.b16 %v525
      %v1249 = vunpack.c.h.b16 %v525
      %v1250 = vunpack.c.l.b16 %v526
      %v1251 = vunpack.c.h.b16 %v526
      %v1252 = vunpack.c.l.b16 %v527
      %v1253 = vunpack.c.h.b16 %v527
      %v1254 = vunpack.c.l.b16 %v528
      %v1255 = vunpack.c.h.b16 %v528
      %v1256 = vunpack.c.l.b16 %v529
      %v1257 = vunpack.c.h.b16 %v529
      %v1258 = vunpack.c.l.b16 %v530
      %v1259 = vunpack.c.h.b16 %v530
      %v1260 = vunpack.c.l.b16 %v531
      %v1261 = vunpack.c.h.b16 %v531
      %v1262 = vunpack.c.l.b16 %v532
      %v1263 = vunpack.c.h.b16 %v532
      %v1264 = vunpack.c.l.b16 %v533
      %v1265 = vunpack.c.h.b16 %v533
      %v1266 = vunpack.c.l.b16 %v534
      %v1267 = vunpack.c.h.b16 %v534
      %v1268 = vunpack.c.l.b16 %v535
      %v1269 = vunpack.c.h.b16 %v535
      %v1270 = vunpack.c.l.b16 %v536
      %v1271 = vunpack.c.h.b16 %v536
      %v1272 = vunpack.c.l.b16 %v537
      %v1273 = vunpack.c.h.b16 %v537
      %v1274 = vunpack.c.l.b16 %v538
      %v1275 = vunpack.c.h.b16 %v538
      %v1276 = vunpack.c.l.b16 %v539
      %v1277 = vunpack.c.h.b16 %v539
      %v1278 = vunpack.c.l.b16 %v540
      %v1279 = vunpack.c.h.b16 %v540
      %v1280 = vunpack.c.l.b16 %v541
      %v1281 = vunpack.c.h.b16 %v541
      %v1282 = vunpack.c.l.b16 %v542
      %v1283 = vunpack.c.h.b16 %v542
      %v1284 = vunpack.c.l.b16 %v543
      %v1285 = vunpack.c.h.b16 %v543
      %v1286 = vunpack.c.l.b16 %v544
      %v1287 = vunpack.c.h.b16 %v544
      %v1288 = vunpack.c.l.b16 %v545
      %v1289 = vunpack.c.h.b16 %v545
      %v1290 = vunpack.c.l.b16 %v546
      %v1291 = vunpack.c.h.b16 %v546
      %v1292 = vunpack.c.l.b16 %v547
      %v1293 = vunpack.c.h.b16 %v547
      %v1294 = vunpack.c.l.b16 %v548
      %v1295 = vunpack.c.h.b16 %v548
      %v1296 = vunpack.c.l.b16 %v549
      %v1297 = vunpack.c.h.b16 %v549
      %v1298 = vunpack.c.l.b16 %v550
      %v1299 = vunpack.c.h.b16 %v550
      %v1300 = vunpack.c.l.b16 %v551
      %v1301 = vunpack.c.h.b16 %v551
      %v1302 = vunpack.c.l.b16 %v552
      %v1303 = vunpack.c.h.b16 %v552
      %v1304 = vunpack.c.l.b16 %v553
      %v1305 = vunpack.c.h.b16 %v553
      %v1306 = vunpack.c.l.b16 %v554
      %v1307 = vunpack.c.h.b16 %v554
      %v1308 = vunpack.c.l.b16 %v555
      %v1309 = vunpack.c.h.b16 %v555
      %v1310 = vunpack.c.l.b16 %v556
      %v1311 = vunpack.c.h.b16 %v556
      %v1312 = vunpack.c.l.b16 %v557
      %v1313 = vunpack.c.h.b16 %v557
      %v1314 = vunpack.c.l.b16 %v558
      %v1315 = vunpack.c.h.b16 %v558
      %v1316 = vunpack.c.l.b16 %v559
      %v1317 = vunpack.c.h.b16 %v559
      %v1318 = vunpack.c.l.b16 %v560
      %v1319 = vunpack.c.h.b16 %v560
      %v1320 = vunpack.c.l.b16 %v561
      %v1321 = vunpack.c.h.b16 %v561
      %v1322 = vunpack.c.l.b16 %v562
      %v1323 = vunpack.c.h.b16 %v562
      %v1324 = vunpack.c.l.b16 %v563
      %v1325 = vunpack.c.h.b16 %v563
      %v1326 = vunpack.c.l.b16 %v564
      %v1327 = vunpack.c.h.b16 %v564
      %v1328 = vunpack.c.l.b16 %v565
      %v1329 = vunpack.c.h.b16 %v565
      %v1330 = vunpack.c.l.b16 %v566
      %v1331 = vunpack.c.h.b16 %v566
      %v1332 = vunpack.c.l.b16 %v567
      %v1333 = vunpack.c.h.b16 %v567
      %v1334 = vunpack.c.l.b16 %v568
      %v1335 = vunpack.c.h.b16 %v568
      %v1336 = vunpack.c.l.b16 %v569
      %v1337 = vunpack.c.h.b16 %v569
      %v1338 = vunpack.c.l.b16 %v570
      %v1339 = vunpack.c.h.b16 %v570
      %v1340 = vunpack.c.l.b16 %v571
      %v1341 = vunpack.c.h.b16 %v571
      %v1342 = vunpack.c.l.b16 %v572
      %v1343 = vunpack.c.h.b16 %v572
      %v1344 = vunpack.c.l.b16 %v573
      %v1345 = vunpack.c.h.b16 %v573
      %v1346 = vunpack.c.l.b16 %v574
      %v1347 = vunpack.c.h.b16 %v574
      %v1348 = vunpack.c.l.b16 %v575
      %v1349 = vunpack.c.h.b16 %v575
      %v1350 = vunpack.c.l.b16 %v576
      %v1351 = vunpack.c.h.b16 %v576
      %v1352 = vunpack.c.l.b16 %v577
      %v1353 = vunpack.c.h.b16 %v577
      %v1354 = vunpack.c.l.b16 %v578
      %v1355 = vunpack.c.h.b16 %v578
      %v1356 = vunpack.c.l.b16 %v579
      %v1357 = vunpack.c.h.b16 %v579
      %v1358 = vunpack.c.l.b16 %v580
      %v1359 = vunpack.c.h.b16 %v580
      %v1360 = vunpack.c.l.b16 %v581
      %v1361 = vunpack.c.h.b16 %v581
      %v1362 = vunpack.c.l.b16 %v582
      %v1363 = vunpack.c.h.b16 %v582
      %v1364 = vunpack.c.l.b16 %v583
      %v1365 = vunpack.c.h.b16 %v583
      %v1366 = vpack.c.b16 %v862, %v854
      %v1367 = vpack.c.b16 %v863, %v855
      %v1368 = vpack.c.b16 %v864, %v856
      %v1369 = vpack.c.b16 %v865, %v857
      %v1370 = vpack.c.b16 %v866, %v858
      %v1371 = vpack.c.b16 %v867, %v859
      %v1372 = vpack.c.b16 %v868, %v860
      %v1373 = vpack.c.b16 %v869, %v861
      %v1374 = vpack.c.b16 %v878, %v870
      %v1375 = vpack.c.b16 %v879, %v871
      %v1376 = vpack.c.b16 %v880, %v872
      %v1377 = vpack.c.b16 %v881, %v873
      %v1378 = vpack.c.b16 %v882, %v874
      %v1379 = vpack.c.b16 %v883, %v875
      %v1380 = vpack.c.b16 %v884, %v876
      %v1381 = vpack.c.b16 %v885, %v877
      %v1382 = vpack.c.b16 %v894, %v886
      %v1383 = vpack.c.b16 %v895, %v887
      %v1384 = vpack.c.b16 %v896, %v888
      %v1385 = vpack.c.b16 %v897, %v889
      %v1386 = vpack.c.b16 %v898, %v890
      %v1387 = vpack.c.b16 %v899, %v891
      %v1388 = vpack.c.b16 %v900, %v892
      %v1389 = vpack.c.b16 %v901, %v893
      %v1390 = vpack.c.b16 %v910, %v902
      %v1391 = vpack.c.b16 %v911, %v903
      %v1392 = vpack.c.b16 %v912, %v904
      %v1393 = vpack.c.b16 %v913, %v905
      %v1394 = vpack.c.b16 %v914, %v906
      %v1395 = vpack.c.b16 %v915, %v907
      %v1396 = vpack.c.b16 %v916, %v908
      %v1397 = vpack.c.b16 %v917, %v909
      %v1398 = vpack.c.b16 %v926, %v918
      %v1399 = vpack.c.b16 %v927, %v919
      %v1400 = vpack.c.b16 %v928, %v920
      %v1401 = vpack.c.b16 %v929, %v921
      %v1402 = vpack.c.b16 %v930, %v922
      %v1403 = vpack.c.b16 %v931, %v923
      %v1404 = vpack.c.b16 %v932, %v924
      %v1405 = vpack.c.b16 %v933, %v925
      %v1406 = vpack.c.b16 %v942, %v934
      %v1407 = vpack.c.b16 %v943, %v935
      %v1408 = vpack.c.b16 %v944, %v936
      %v1409 = vpack.c.b16 %v945, %v937
      %v1410 = vpack.c.b16 %v946, %v938
      %v1411 = vpack.c.b16 %v947, %v939
      %v1412 = vpack.c.b16 %v948, %v940
      %v1413 = vpack.c.b16 %v949, %v941
      %v1414 = vpack.c.b16 %v958, %v950
      %v1415 = vpack.c.b16 %v959, %v951
      %v1416 = vpack.c.b16 %v960, %v952
      %v1417 = vpack.c.b16 %v961, %v953
      %v1418 = vpack.c.b16 %v962, %v954
      %v1419 = vpack.c.b16 %v963, %v955
      %v1420 = vpack.c.b16 %v964, %v956
      %v1421 = vpack.c.b16 %v965, %v957
      %v1422 = vpack.c.b16 %v974, %v966
      %v1423 = vpack.c.b16 %v975, %v967
      %v1424 = vpack.c.b16 %v976, %v968
      %v1425 = vpack.c.b16 %v977, %v969
      %v1426 = vpack.c.b16 %v978, %v970
      %v1427 = vpack.c.b16 %v979, %v971
      %v1428 = vpack.c.b16 %v980, %v972
      %v1429 = vpack.c.b16 %v981, %v973
      %v1430 = vpack.c.b16 %v990, %v982
      %v1431 = vpack.c.b16 %v991, %v983
      %v1432 = vpack.c.b16 %v992, %v984
      %v1433 = vpack.c.b16 %v993, %v985
      %v1434 = vpack.c.b16 %v994, %v986
      %v1435 = vpack.c.b16 %v995, %v987
      %v1436 = vpack.c.b16 %v996, %v988
      %v1437 = vpack.c.b16 %v997, %v989
      %v1438 = vpack.c.b16 %v1006, %v998
      %v1439 = vpack.c.b16 %v1007, %v999
      %v1440 = vpack.c.b16 %v1008, %v1000
      %v1441 = vpack.c.b16 %v1009, %v1001
      %v1442 = vpack.c.b16 %v1010, %v1002
      %v1443 = vpack.c.b16 %v1011, %v1003
      %v1444 = vpack.c.b16 %v1012, %v1004
      %v1445 = vpack.c.b16 %v1013, %v1005
      %v1446 = vpack.c.b16 %v1022, %v1014
      %v1447 = vpack.c.b16 %v1023, %v1015
      %v1448 = vpack.c.b16 %v1024, %v1016
      %v1449 = vpack.c.b16 %v1025, %v1017
      %v1450 = vpack.c.b16 %v1026, %v1018
      %v1451 = vpack.c.b16 %v1027, %v1019
      %v1452 = vpack.c.b16 %v1028, %v1020
      %v1453 = vpack.c.b16 %v1029, %v1021
      %v1454 = vpack.c.b16 %v1038, %v1030
      %v1455 = vpack.c.b16 %v1039, %v1031
      %v1456 = vpack.c.b16 %v1040, %v1032
      %v1457 = vpack.c.b16 %v1041, %v1033
      %v1458 = vpack.c.b16 %v1042, %v1034
      %v1459 = vpack.c.b16 %v1043, %v1035
      %v1460 = vpack.c.b16 %v1044, %v1036
      %v1461 = vpack.c.b16 %v1045, %v1037
      %v1462 = vpack.c.b16 %v1054, %v1046
      %v1463 = vpack.c.b16 %v1055, %v1047
      %v1464 = vpack.c.b16 %v1056, %v1048
      %v1465 = vpack.c.b16 %v1057, %v1049
      %v1466 = vpack.c.b16 %v1058, %v1050
      %v1467 = vpack.c.b16 %v1059, %v1051
      %v1468 = vpack.c.b16 %v1060, %v1052
      %v1469 = vpack.c.b16 %v1061, %v1053
      %v1470 = vpack.c.b16 %v1070, %v1062
      %v1471 = vpack.c.b16 %v1071, %v1063
      %v1472 = vpack.c.b16 %v1072, %v1064
      %v1473 = vpack.c.b16 %v1073, %v1065
      %v1474 = vpack.c.b16 %v1074, %v1066
      %v1475 = vpack.c.b16 %v1075, %v1067
      %v1476 = vpack.c.b16 %v1076, %v1068
      %v1477 = vpack.c.b16 %v1077, %v1069
      %v1478 = vpack.c.b16 %v1086, %v1078
      %v1479 = vpack.c.b16 %v1087, %v1079
      %v1480 = vpack.c.b16 %v1088, %v1080
      %v1481 = vpack.c.b16 %v1089, %v1081
      %v1482 = vpack.c.b16 %v1090, %v1082
      %v1483 = vpack.c.b16 %v1091, %v1083
      %v1484 = vpack.c.b16 %v1092, %v1084
      %v1485 = vpack.c.b16 %v1093, %v1085
      %v1486 = vpack.c.b16 %v1102, %v1094
      %v1487 = vpack.c.b16 %v1103, %v1095
      %v1488 = vpack.c.b16 %v1104, %v1096
      %v1489 = vpack.c.b16 %v1105, %v1097
      %v1490 = vpack.c.b16 %v1106, %v1098
      %v1491 = vpack.c.b16 %v1107, %v1099
      %v1492 = vpack.c.b16 %v1108, %v1100
      %v1493 = vpack.c.b16 %v1109, %v1101
      %v1494 = vpack.c.b16 %v1118, %v1110
      %v1495 = vpack.c.b16 %v1119, %v1111
      %v1496 = vpack.c.b16 %v1120, %v1112
      %v1497 = vpack.c.b16 %v1121, %v1113
      %v1498 = vpack.c.b16 %v1122, %v1114
      %v1499 = vpack.c.b16 %v1123, %v1115
      %v1500 = vpack.c.b16 %v1124, %v1116
      %v1501 = vpack.c.b16 %v1125, %v1117
      %v1502 = vpack.c.b16 %v1134, %v1126
      %v1503 = vpack.c.b16 %v1135, %v1127
      %v1504 = vpack.c.b16 %v1136, %v1128
      %v1505 = vpack.c.b16 %v1137, %v1129
      %v1506 = vpack.c.b16 %v1138, %v1130
      %v1507 = vpack.c.b16 %v1139, %v1131
      %v1508 = vpack.c.b16 %v1140, %v1132
      %v1509 = vpack.c.b16 %v1141, %v1133
      %v1510 = vpack.c.b16 %v1150, %v1142
      %v1511 = vpack.c.b16 %v1151, %v1143
      %v1512 = vpack.c.b16 %v1152, %v1144
      %v1513 = vpack.c.b16 %v1153, %v1145
      %v1514 = vpack.c.b16 %v1154, %v1146
      %v1515 = vpack.c.b16 %v1155, %v1147
      %v1516 = vpack.c.b16 %v1156, %v1148
      %v1517 = vpack.c.b16 %v1157, %v1149
      %v1518 = vpack.c.b16 %v1166, %v1158
      %v1519 = vpack.c.b16 %v1167, %v1159
      %v1520 = vpack.c.b16 %v1168, %v1160
      %v1521 = vpack.c.b16 %v1169, %v1161
      %v1522 = vpack.c.b16 %v1170, %v1162
      %v1523 = vpack.c.b16 %v1171, %v1163
      %v1524 = vpack.c.b16 %v1172, %v1164
      %v1525 = vpack.c.b16 %v1173, %v1165
      %v1526 = vpack.c.b16 %v1182, %v1174
      %v1527 = vpack.c.b16 %v1183, %v1175
      %v1528 = vpack.c.b16 %v1184, %v1176
      %v1529 = vpack.c.b16 %v1185, %v1177
      %v1530 = vpack.c.b16 %v1186, %v1178
      %v1531 = vpack.c.b16 %v1187, %v1179
      %v1532 = vpack.c.b16 %v1188, %v1180
      %v1533 = vpack.c.b16 %v1189, %v1181
      %v1534 = vpack.c.b16 %v1198, %v1190
      %v1535 = vpack.c.b16 %v1199, %v1191
      %v1536 = vpack.c.b16 %v1200, %v1192
      %v1537 = vpack.c.b16 %v1201, %v1193
      %v1538 = vpack.c.b16 %v1202, %v1194
      %v1539 = vpack.c.b16 %v1203, %v1195
      %v1540 = vpack.c.b16 %v1204, %v1196
      %v1541 = vpack.c.b16 %v1205, %v1197
      %v1542 = vpack.c.b16 %v1214, %v1206
      %v1543 = vpack.c.b16 %v1215, %v1207
      %v1544 = vpack.c.b16 %v1216, %v1208
      %v1545 = vpack.c.b16 %v1217, %v1209
      %v1546 = vpack.c.b16 %v1218, %v1210
      %v1547 = vpack.c.b16 %v1219, %v1211
      %v1548 = vpack.c.b16 %v1220, %v1212
      %v1549 = vpack.c.b16 %v1221, %v1213
      %v1550 = vpack.c.b16 %v1230, %v1222
      %v1551 = vpack.c.b16 %v1231, %v1223
      %v1552 = vpack.c.b16 %v1232, %v1224
      %v1553 = vpack.c.b16 %v1233, %v1225
      %v1554 = vpack.c.b16 %v1234, %v1226
      %v1555 = vpack.c.b16 %v1235, %v1227
      %v1556 = vpack.c.b16 %v1236, %v1228
      %v1557 = vpack.c.b16 %v1237, %v1229
      %v1558 = vpack.c.b16 %v1246, %v1238
      %v1559 = vpack.c.b16 %v1247, %v1239
      %v1560 = vpack.c.b16 %v1248, %v1240
      %v1561 = vpack.c.b16 %v1249, %v1241
      %v1562 = vpack.c.b16 %v1250, %v1242
      %v1563 = vpack.c.b16 %v1251, %v1243
      %v1564 = vpack.c.b16 %v1252, %v1244
      %v1565 = vpack.c.b16 %v1253, %v1245
      %v1566 = vpack.c.b16 %v1262, %v1254
      %v1567 = vpack.c.b16 %v1263, %v1255
      %v1568 = vpack.c.b16 %v1264, %v1256
      %v1569 = vpack.c.b16 %v1265, %v1257
      %v1570 = vpack.c.b16 %v1266, %v1258
      %v1571 = vpack.c.b16 %v1267, %v1259
      %v1572 = vpack.c.b16 %v1268, %v1260
      %v1573 = vpack.c.b16 %v1269, %v1261
      %v1574 = vpack.c.b16 %v1278, %v1270
      %v1575 = vpack.c.b16 %v1279, %v1271
      %v1576 = vpack.c.b16 %v1280, %v1272
      %v1577 = vpack.c.b16 %v1281, %v1273
      %v1578 = vpack.c.b16 %v1282, %v1274
      %v1579 = vpack.c.b16 %v1283, %v1275
      %v1580 = vpack.c.b16 %v1284, %v1276
      %v1581 = vpack.c.b16 %v1285, %v1277
      %v1582 = vpack.c.b16 %v1294, %v1286
      %v1583 = vpack.c.b16 %v1295, %v1287
      %v1584 = vpack.c.b16 %v1296, %v1288
      %v1585 = vpack.c.b16 %v1297, %v1289
      %v1586 = vpack.c.b16 %v1298, %v1290
      %v1587 = vpack.c.b16 %v1299, %v1291
      %v1588 = vpack.c.b16 %v1300, %v1292
      %v1589 = vpack.c.b16 %v1301, %v1293
      %v1590 = vpack.c.b16 %v1310, %v1302
      %v1591 = vpack.c.b16 %v1311, %v1303
      %v1592 = vpack.c.b16 %v1312, %v1304
      %v1593 = vpack.c.b16 %v1313, %v1305
      %v1594 = vpack.c.b16 %v1314, %v1306
      %v1595 = vpack.c.b16 %v1315, %v1307
      %v1596 = vpack.c.b16 %v1316, %v1308
      %v1597 = vpack.c.b16 %v1317, %v1309
      %v1598 = vpack.c.b16 %v1326, %v1318
      %v1599 = vpack.c.b16 %v1327, %v1319
      %v1600 = vpack.c.b16 %v1328, %v1320
      %v1601 = vpack.c.b16 %v1329, %v1321
      %v1602 = vpack.c.b16 %v1330, %v1322
      %v1603 = vpack.c.b16 %v1331, %v1323
      %v1604 = vpack.c.b16 %v1332, %v1324
      %v1605 = vpack.c.b16 %v1333, %v1325
      %v1606 = vpack.c.b16 %v1342, %v1334
      %v1607 = vpack.c.b16 %v1343, %v1335
      %v1608 = vpack.c.b16 %v1344, %v1336
      %v1609 = vpack.c.b16 %v1345, %v1337
      %v1610 = vpack.c.b16 %v1346, %v1338
      %v1611 = vpack.c.b16 %v1347, %v1339
      %v1612 = vpack.c.b16 %v1348, %v1340
      %v1613 = vpack.c.b16 %v1349, %v1341
      %v1614 = vpack.c.b16 %v1358, %v1350
      %v1615 = vpack.c.b16 %v1359, %v1351
      %v1616 = vpack.c.b16 %v1360, %v1352
      %v1617 = vpack.c.b16 %v1361, %v1353
      %v1618 = vpack.c.b16 %v1362, %v1354
      %v1619 = vpack.c.b16 %v1363, %v1355
      %v1620 = vpack.c.b16 %v1364, %v1356
      %v1621 = vpack.c.b16 %v1365, %v1357
      %1878 = vmatpush.bf16.msra.mxu0 %v1422
      %1879 = vmatpush.bf16.msra.mxu0 %v1414
      %1880 = vmatpush.bf16.msra.mxu0 %v1406
      %1881 = vmatpush.bf16.msra.mxu0 %v1398
      %1882 = vmatpush.bf16.msra.mxu0 %v1390
      %1883 = vmatpush.bf16.msra.mxu0 %v1382
      %1884 = vmatpush.bf16.msra.mxu0 %v1374
      %1885 = vmatpush.bf16.msra.mxu0 %v1366
      %1886 = vmatmul.bf16.gmra.mxu0 %v590
      %v1887 = vpop.f32.mrf.mxu0
      %v1888 = vadd.f32 0.0, %v1887
      %v1889 = vpop.f32.mrf.mxu0
      %1890 = vdwg.mxu0
      %1891 = vmatpush.bf16.msra.mxu0 %v1486
      %1892 = vmatpush.bf16.msra.mxu0 %v1478
      %1893 = vmatpush.bf16.msra.mxu0 %v1470
      %1894 = vmatpush.bf16.msra.mxu0 %v1462
      %1895 = vmatpush.bf16.msra.mxu0 %v1454
      %1896 = vmatpush.bf16.msra.mxu0 %v1446
      %1897 = vmatpush.bf16.msra.mxu0 %v1438
      %1898 = vmatpush.bf16.msra.mxu0 %v1430
      %1899 = vmatmul.bf16.gmra.mxu0 %v591
      %v1900 = vpop.f32.mrf.mxu0
      %v1901 = vadd.f32 %v1888, %v1900
      %v1902 = vpop.f32.mrf.mxu0
      %1903 = vdwg.mxu0
      %1904 = vmatpush.bf16.msra.mxu0 %v1550
      %1905 = vmatpush.bf16.msra.mxu0 %v1542
      %1906 = vmatpush.bf16.msra.mxu0 %v1534
      %1907 = vmatpush.bf16.msra.mxu0 %v1526
      %1908 = vmatpush.bf16.msra.mxu0 %v1518
      %1909 = vmatpush.bf16.msra.mxu0 %v1510
      %1910 = vmatpush.bf16.msra.mxu0 %v1502
      %1911 = vmatpush.bf16.msra.mxu0 %v1494
      %1912 = vmatmul.bf16.gmra.mxu0 %v592
      %v1913 = vpop.f32.mrf.mxu0
      %v1914 = vadd.f32 %v1901, %v1913
      %v1915 = vpop.f32.mrf.mxu0
      %1916 = vdwg.mxu0
      %1917 = vmatpush.bf16.msra.mxu0 %v1614
      %1918 = vmatpush.bf16.msra.mxu0 %v1606
      %1919 = vmatpush.bf16.msra.mxu0 %v1598
      %1920 = vmatpush.bf16.msra.mxu0 %v1590
      %1921 = vmatpush.bf16.msra.mxu0 %v1582
      %1922 = vmatpush.bf16.msra.mxu0 %v1574
      %1923 = vmatpush.bf16.msra.mxu0 %v1566
      %1924 = vmatpush.bf16.msra.mxu0 %v1558
      %1925 = vmatmul.bf16.gmra.mxu0 %v593
      %v1926 = vpop.f32.mrf.mxu0
      %v1927 = vadd.f32 %v1914, %v1926
      %v1928 = vpop.f32.mrf.mxu0
      %1929 = vdwg.mxu0
      %1930 = vmatpush.bf16.msra.mxu0 %v1423
      %1931 = vmatpush.bf16.msra.mxu0 %v1415
      %1932 = vmatpush.bf16.msra.mxu0 %v1407
      %1933 = vmatpush.bf16.msra.mxu0 %v1399
      %1934 = vmatpush.bf16.msra.mxu0 %v1391
      %1935 = vmatpush.bf16.msra.mxu0 %v1383
      %1936 = vmatpush.bf16.msra.mxu0 %v1375
      %1937 = vmatpush.bf16.msra.mxu0 %v1367
      %1938 = vmatmul.bf16.gmra.mxu0 %v590
      %v1939 = vpop.f32.mrf.mxu0
      %v1940 = vadd.f32 0.0, %v1939
      %v1941 = vpop.f32.mrf.mxu0
      %1942 = vdwg.mxu0
      %1943 = vmatpush.bf16.msra.mxu0 %v1487
      %1944 = vmatpush.bf16.msra.mxu0 %v1479
      %1945 = vmatpush.bf16.msra.mxu0 %v1471
      %1946 = vmatpush.bf16.msra.mxu0 %v1463
      %1947 = vmatpush.bf16.msra.mxu0 %v1455
      %1948 = vmatpush.bf16.msra.mxu0 %v1447
      %1949 = vmatpush.bf16.msra.mxu0 %v1439
      %1950 = vmatpush.bf16.msra.mxu0 %v1431
      %1951 = vmatmul.bf16.gmra.mxu0 %v591
      %v1952 = vpop.f32.mrf.mxu0
      %v1953 = vadd.f32 %v1940, %v1952
      %v1954 = vpop.f32.mrf.mxu0
      %1955 = vdwg.mxu0
      %1956 = vmatpush.bf16.msra.mxu0 %v1551
      %1957 = vmatpush.bf16.msra.mxu0 %v1543
      %1958 = vmatpush.bf16.msra.mxu0 %v1535
      %1959 = vmatpush.bf16.msra.mxu0 %v1527
      %1960 = vmatpush.bf16.msra.mxu0 %v1519
      %1961 = vmatpush.bf16.msra.mxu0 %v1511
      %1962 = vmatpush.bf16.msra.mxu0 %v1503
      %1963 = vmatpush.bf16.msra.mxu0 %v1495
      %1964 = vmatmul.bf16.gmra.mxu0 %v592
      %v1965 = vpop.f32.mrf.mxu0
      %v1966 = vadd.f32 %v1953, %v1965
      %v1967 = vpop.f32.mrf.mxu0
      %1968 = vdwg.mxu0
      %1969 = vmatpush.bf16.msra.mxu0 %v1615
      %1970 = vmatpush.bf16.msra.mxu0 %v1607
      %1971 = vmatpush.bf16.msra.mxu0 %v1599
      %1972 = vmatpush.bf16.msra.mxu0 %v1591
      %1973 = vmatpush.bf16.msra.mxu0 %v1583
      %1974 = vmatpush.bf16.msra.mxu0 %v1575
      %1975 = vmatpush.bf16.msra.mxu0 %v1567
      %1976 = vmatpush.bf16.msra.mxu0 %v1559
      %1977 = vmatmul.bf16.gmra.mxu0 %v593
      %v1978 = vpop.f32.mrf.mxu0
      %v1979 = vadd.f32 %v1966, %v1978
      %v1980 = vpop.f32.mrf.mxu0
      %1981 = vdwg.mxu0
      %1982 = vmatpush.bf16.msra.mxu0 %v1424
      %1983 = vmatpush.bf16.msra.mxu0 %v1416
      %1984 = vmatpush.bf16.msra.mxu0 %v1408
      %1985 = vmatpush.bf16.msra.mxu0 %v1400
      %1986 = vmatpush.bf16.msra.mxu0 %v1392
      %1987 = vmatpush.bf16.msra.mxu0 %v1384
      %1988 = vmatpush.bf16.msra.mxu0 %v1376
      %1989 = vmatpush.bf16.msra.mxu0 %v1368
      %1990 = vmatmul.bf16.gmra.mxu0 %v590
      %v1991 = vpop.f32.mrf.mxu0
      %v1992 = vadd.f32 0.0, %v1991
      %v1993 = vpop.f32.mrf.mxu0
      %1994 = vdwg.mxu0
      %1995 = vmatpush.bf16.msra.mxu0 %v1488
      %1996 = vmatpush.bf16.msra.mxu0 %v1480
      %1997 = vmatpush.bf16.msra.mxu0 %v1472
      %1998 = vmatpush.bf16.msra.mxu0 %v1464
      %1999 = vmatpush.bf16.msra.mxu0 %v1456
      %2000 = vmatpush.bf16.msra.mxu0 %v1448
      %2001 = vmatpush.bf16.msra.mxu0 %v1440
      %2002 = vmatpush.bf16.msra.mxu0 %v1432
      %2003 = vmatmul.bf16.gmra.mxu0 %v591
      %v2004 = vpop.f32.mrf.mxu0
      %v2005 = vadd.f32 %v1992, %v2004
      %v2006 = vpop.f32.mrf.mxu0
      %2007 = vdwg.mxu0
      %2008 = vmatpush.bf16.msra.mxu0 %v1552
      %2009 = vmatpush.bf16.msra.mxu0 %v1544
      %2010 = vmatpush.bf16.msra.mxu0 %v1536
      %2011 = vmatpush.bf16.msra.mxu0 %v1528
      %2012 = vmatpush.bf16.msra.mxu0 %v1520
      %2013 = vmatpush.bf16.msra.mxu0 %v1512
      %2014 = vmatpush.bf16.msra.mxu0 %v1504
      %2015 = vmatpush.bf16.msra.mxu0 %v1496
      %2016 = vmatmul.bf16.gmra.mxu0 %v592
      %v2017 = vpop.f32.mrf.mxu0
      %v2018 = vadd.f32 %v2005, %v2017
      %v2019 = vpop.f32.mrf.mxu0
      %2020 = vdwg.mxu0
      %2021 = vmatpush.bf16.msra.mxu0 %v1616
      %2022 = vmatpush.bf16.msra.mxu0 %v1608
      %2023 = vmatpush.bf16.msra.mxu0 %v1600
      %2024 = vmatpush.bf16.msra.mxu0 %v1592
      %2025 = vmatpush.bf16.msra.mxu0 %v1584
      %2026 = vmatpush.bf16.msra.mxu0 %v1576
      %2027 = vmatpush.bf16.msra.mxu0 %v1568
      %2028 = vmatpush.bf16.msra.mxu0 %v1560
      %2029 = vmatmul.bf16.gmra.mxu0 %v593
      %v2030 = vpop.f32.mrf.mxu0
      %v2031 = vadd.f32 %v2018, %v2030
      %v2032 = vpop.f32.mrf.mxu0
      %2033 = vdwg.mxu0
      %2034 = vmatpush.bf16.msra.mxu0 %v1425
      %2035 = vmatpush.bf16.msra.mxu0 %v1417
      %2036 = vmatpush.bf16.msra.mxu0 %v1409
      %2037 = vmatpush.bf16.msra.mxu0 %v1401
      %2038 = vmatpush.bf16.msra.mxu0 %v1393
      %2039 = vmatpush.bf16.msra.mxu0 %v1385
      %2040 = vmatpush.bf16.msra.mxu0 %v1377
      %2041 = vmatpush.bf16.msra.mxu0 %v1369
      %2042 = vmatmul.bf16.gmra.mxu0 %v590
      %v2043 = vpop.f32.mrf.mxu0
      %v2044 = vadd.f32 0.0, %v2043
      %v2045 = vpop.f32.mrf.mxu0
      %2046 = vdwg.mxu0
      %2047 = vmatpush.bf16.msra.mxu0 %v1489
      %2048 = vmatpush.bf16.msra.mxu0 %v1481
      %2049 = vmatpush.bf16.msra.mxu0 %v1473
      %2050 = vmatpush.bf16.msra.mxu0 %v1465
      %2051 = vmatpush.bf16.msra.mxu0 %v1457
      %2052 = vmatpush.bf16.msra.mxu0 %v1449
      %2053 = vmatpush.bf16.msra.mxu0 %v1441
      %2054 = vmatpush.bf16.msra.mxu0 %v1433
      %2055 = vmatmul.bf16.gmra.mxu0 %v591
      %v2056 = vpop.f32.mrf.mxu0
      %v2057 = vadd.f32 %v2044, %v2056
      %v2058 = vpop.f32.mrf.mxu0
      %2059 = vdwg.mxu0
      %2060 = vmatpush.bf16.msra.mxu0 %v1553
      %2061 = vmatpush.bf16.msra.mxu0 %v1545
      %2062 = vmatpush.bf16.msra.mxu0 %v1537
      %2063 = vmatpush.bf16.msra.mxu0 %v1529
      %2064 = vmatpush.bf16.msra.mxu0 %v1521
      %2065 = vmatpush.bf16.msra.mxu0 %v1513
      %2066 = vmatpush.bf16.msra.mxu0 %v1505
      %2067 = vmatpush.bf16.msra.mxu0 %v1497
      %2068 = vmatmul.bf16.gmra.mxu0 %v592
      %v2069 = vpop.f32.mrf.mxu0
      %v2070 = vadd.f32 %v2057, %v2069
      %v2071 = vpop.f32.mrf.mxu0
      %2072 = vdwg.mxu0
      %2073 = vmatpush.bf16.msra.mxu0 %v1617
      %2074 = vmatpush.bf16.msra.mxu0 %v1609
      %2075 = vmatpush.bf16.msra.mxu0 %v1601
      %2076 = vmatpush.bf16.msra.mxu0 %v1593
      %2077 = vmatpush.bf16.msra.mxu0 %v1585
      %2078 = vmatpush.bf16.msra.mxu0 %v1577
      %2079 = vmatpush.bf16.msra.mxu0 %v1569
      %2080 = vmatpush.bf16.msra.mxu0 %v1561
      %2081 = vmatmul.bf16.gmra.mxu0 %v593
      %v2082 = vpop.f32.mrf.mxu0
      %v2083 = vadd.f32 %v2070, %v2082
      %v2084 = vpop.f32.mrf.mxu0
      %2085 = vdwg.mxu0
      %2086 = vmatpush.bf16.msra.mxu0 %v1426
      %2087 = vmatpush.bf16.msra.mxu0 %v1418
      %2088 = vmatpush.bf16.msra.mxu0 %v1410
      %2089 = vmatpush.bf16.msra.mxu0 %v1402
      %2090 = vmatpush.bf16.msra.mxu0 %v1394
      %2091 = vmatpush.bf16.msra.mxu0 %v1386
      %2092 = vmatpush.bf16.msra.mxu0 %v1378
      %2093 = vmatpush.bf16.msra.mxu0 %v1370
      %2094 = vmatmul.bf16.gmra.mxu0 %v590
      %v2095 = vpop.f32.mrf.mxu0
      %v2096 = vadd.f32 0.0, %v2095
      %v2097 = vpop.f32.mrf.mxu0
      %2098 = vdwg.mxu0
      %2099 = vmatpush.bf16.msra.mxu0 %v1490
      %2100 = vmatpush.bf16.msra.mxu0 %v1482
      %2101 = vmatpush.bf16.msra.mxu0 %v1474
      %2102 = vmatpush.bf16.msra.mxu0 %v1466
      %2103 = vmatpush.bf16.msra.mxu0 %v1458
      %2104 = vmatpush.bf16.msra.mxu0 %v1450
      %2105 = vmatpush.bf16.msra.mxu0 %v1442
      %2106 = vmatpush.bf16.msra.mxu0 %v1434
      %2107 = vmatmul.bf16.gmra.mxu0 %v591
      %v2108 = vpop.f32.mrf.mxu0
      %v2109 = vadd.f32 %v2096, %v2108
      %v2110 = vpop.f32.mrf.mxu0
      %2111 = vdwg.mxu0
      %2112 = vmatpush.bf16.msra.mxu0 %v1554
      %2113 = vmatpush.bf16.msra.mxu0 %v1546
      %2114 = vmatpush.bf16.msra.mxu0 %v1538
      %2115 = vmatpush.bf16.msra.mxu0 %v1530
      %2116 = vmatpush.bf16.msra.mxu0 %v1522
      %2117 = vmatpush.bf16.msra.mxu0 %v1514
      %2118 = vmatpush.bf16.msra.mxu0 %v1506
      %2119 = vmatpush.bf16.msra.mxu0 %v1498
      %2120 = vmatmul.bf16.gmra.mxu0 %v592
      %v2121 = vpop.f32.mrf.mxu0
      %v2122 = vadd.f32 %v2109, %v2121
      %v2123 = vpop.f32.mrf.mxu0
      %2124 = vdwg.mxu0
      %2125 = vmatpush.bf16.msra.mxu0 %v1618
      %2126 = vmatpush.bf16.msra.mxu0 %v1610
      %2127 = vmatpush.bf16.msra.mxu0 %v1602
      %2128 = vmatpush.bf16.msra.mxu0 %v1594
      %2129 = vmatpush.bf16.msra.mxu0 %v1586
      %2130 = vmatpush.bf16.msra.mxu0 %v1578
      %2131 = vmatpush.bf16.msra.mxu0 %v1570
      %2132 = vmatpush.bf16.msra.mxu0 %v1562
      %2133 = vmatmul.bf16.gmra.mxu0 %v593
      %v2134 = vpop.f32.mrf.mxu0
      %v2135 = vadd.f32 %v2122, %v2134
      %v2136 = vpop.f32.mrf.mxu0
      %2137 = vdwg.mxu0
      %2138 = vmatpush.bf16.msra.mxu0 %v1427
      %2139 = vmatpush.bf16.msra.mxu0 %v1419
      %2140 = vmatpush.bf16.msra.mxu0 %v1411
      %2141 = vmatpush.bf16.msra.mxu0 %v1403
      %2142 = vmatpush.bf16.msra.mxu0 %v1395
      %2143 = vmatpush.bf16.msra.mxu0 %v1387
      %2144 = vmatpush.bf16.msra.mxu0 %v1379
      %2145 = vmatpush.bf16.msra.mxu0 %v1371
      %2146 = vmatmul.bf16.gmra.mxu0 %v590
      %v2147 = vpop.f32.mrf.mxu0
      %v2148 = vadd.f32 0.0, %v2147
      %v2149 = vpop.f32.mrf.mxu0
      %2150 = vdwg.mxu0
      %2151 = vmatpush.bf16.msra.mxu0 %v1491
      %2152 = vmatpush.bf16.msra.mxu0 %v1483
      %2153 = vmatpush.bf16.msra.mxu0 %v1475
      %2154 = vmatpush.bf16.msra.mxu0 %v1467
      %2155 = vmatpush.bf16.msra.mxu0 %v1459
      %2156 = vmatpush.bf16.msra.mxu0 %v1451
      %2157 = vmatpush.bf16.msra.mxu0 %v1443
      %2158 = vmatpush.bf16.msra.mxu0 %v1435
      %2159 = vmatmul.bf16.gmra.mxu0 %v591
      %v2160 = vpop.f32.mrf.mxu0
      %v2161 = vadd.f32 %v2148, %v2160
      %v2162 = vpop.f32.mrf.mxu0
      %2163 = vdwg.mxu0
      %2164 = vmatpush.bf16.msra.mxu0 %v1555
      %2165 = vmatpush.bf16.msra.mxu0 %v1547
      %2166 = vmatpush.bf16.msra.mxu0 %v1539
      %2167 = vmatpush.bf16.msra.mxu0 %v1531
      %2168 = vmatpush.bf16.msra.mxu0 %v1523
      %2169 = vmatpush.bf16.msra.mxu0 %v1515
      %2170 = vmatpush.bf16.msra.mxu0 %v1507
      %2171 = vmatpush.bf16.msra.mxu0 %v1499
      %2172 = vmatmul.bf16.gmra.mxu0 %v592
      %v2173 = vpop.f32.mrf.mxu0
      %v2174 = vadd.f32 %v2161, %v2173
      %v2175 = vpop.f32.mrf.mxu0
      %2176 = vdwg.mxu0
      %2177 = vmatpush.bf16.msra.mxu0 %v1619
      %2178 = vmatpush.bf16.msra.mxu0 %v1611
      %2179 = vmatpush.bf16.msra.mxu0 %v1603
      %2180 = vmatpush.bf16.msra.mxu0 %v1595
      %2181 = vmatpush.bf16.msra.mxu0 %v1587
      %2182 = vmatpush.bf16.msra.mxu0 %v1579
      %2183 = vmatpush.bf16.msra.mxu0 %v1571
      %2184 = vmatpush.bf16.msra.mxu0 %v1563
      %2185 = vmatmul.bf16.gmra.mxu0 %v593
      %v2186 = vpop.f32.mrf.mxu0
      %v2187 = vadd.f32 %v2174, %v2186
      %v2188 = vpop.f32.mrf.mxu0
      %2189 = vdwg.mxu0
      %2190 = vmatpush.bf16.msra.mxu0 %v1428
      %2191 = vmatpush.bf16.msra.mxu0 %v1420
      %2192 = vmatpush.bf16.msra.mxu0 %v1412
      %2193 = vmatpush.bf16.msra.mxu0 %v1404
      %2194 = vmatpush.bf16.msra.mxu0 %v1396
      %2195 = vmatpush.bf16.msra.mxu0 %v1388
      %2196 = vmatpush.bf16.msra.mxu0 %v1380
      %2197 = vmatpush.bf16.msra.mxu0 %v1372
      %2198 = vmatmul.bf16.gmra.mxu0 %v590
      %v2199 = vpop.f32.mrf.mxu0
      %v2200 = vadd.f32 0.0, %v2199
      %v2201 = vpop.f32.mrf.mxu0
      %2202 = vdwg.mxu0
      %2203 = vmatpush.bf16.msra.mxu0 %v1492
      %2204 = vmatpush.bf16.msra.mxu0 %v1484
      %2205 = vmatpush.bf16.msra.mxu0 %v1476
      %2206 = vmatpush.bf16.msra.mxu0 %v1468
      %2207 = vmatpush.bf16.msra.mxu0 %v1460
      %2208 = vmatpush.bf16.msra.mxu0 %v1452
      %2209 = vmatpush.bf16.msra.mxu0 %v1444
      %2210 = vmatpush.bf16.msra.mxu0 %v1436
      %2211 = vmatmul.bf16.gmra.mxu0 %v591
      %v2212 = vpop.f32.mrf.mxu0
      %v2213 = vadd.f32 %v2200, %v2212
      %v2214 = vpop.f32.mrf.mxu0
      %2215 = vdwg.mxu0
      %2216 = vmatpush.bf16.msra.mxu0 %v1556
      %2217 = vmatpush.bf16.msra.mxu0 %v1548
      %2218 = vmatpush.bf16.msra.mxu0 %v1540
      %2219 = vmatpush.bf16.msra.mxu0 %v1532
      %2220 = vmatpush.bf16.msra.mxu0 %v1524
      %2221 = vmatpush.bf16.msra.mxu0 %v1516
      %2222 = vmatpush.bf16.msra.mxu0 %v1508
      %2223 = vmatpush.bf16.msra.mxu0 %v1500
      %2224 = vmatmul.bf16.gmra.mxu0 %v592
      %v2225 = vpop.f32.mrf.mxu0
      %v2226 = vadd.f32 %v2213, %v2225
      %v2227 = vpop.f32.mrf.mxu0
      %2228 = vdwg.mxu0
      %2229 = vmatpush.bf16.msra.mxu0 %v1620
      %2230 = vmatpush.bf16.msra.mxu0 %v1612
      %2231 = vmatpush.bf16.msra.mxu0 %v1604
      %2232 = vmatpush.bf16.msra.mxu0 %v1596
      %2233 = vmatpush.bf16.msra.mxu0 %v1588
      %2234 = vmatpush.bf16.msra.mxu0 %v1580
      %2235 = vmatpush.bf16.msra.mxu0 %v1572
      %2236 = vmatpush.bf16.msra.mxu0 %v1564
      %2237 = vmatmul.bf16.gmra.mxu0 %v593
      %v2238 = vpop.f32.mrf.mxu0
      %v2239 = vadd.f32 %v2226, %v2238
      %v2240 = vpop.f32.mrf.mxu0
      %2241 = vdwg.mxu0
      %2242 = vmatpush.bf16.msra.mxu0 %v1429
      %2243 = vmatpush.bf16.msra.mxu0 %v1421
      %2244 = vmatpush.bf16.msra.mxu0 %v1413
      %2245 = vmatpush.bf16.msra.mxu0 %v1405
      %2246 = vmatpush.bf16.msra.mxu0 %v1397
      %2247 = vmatpush.bf16.msra.mxu0 %v1389
      %2248 = vmatpush.bf16.msra.mxu0 %v1381
      %2249 = vmatpush.bf16.msra.mxu0 %v1373
      %2250 = vmatmul.bf16.gmra.mxu0 %v590
      %v2251 = vpop.f32.mrf.mxu0
      %v2252 = vadd.f32 0.0, %v2251
      %v2253 = vpop.f32.mrf.mxu0
      %2254 = vdwg.mxu0
      %2255 = vmatpush.bf16.msra.mxu0 %v1493
      %2256 = vmatpush.bf16.msra.mxu0 %v1485
      %2257 = vmatpush.bf16.msra.mxu0 %v1477
      %2258 = vmatpush.bf16.msra.mxu0 %v1469
      %2259 = vmatpush.bf16.msra.mxu0 %v1461
      %2260 = vmatpush.bf16.msra.mxu0 %v1453
      %2261 = vmatpush.bf16.msra.mxu0 %v1445
      %2262 = vmatpush.bf16.msra.mxu0 %v1437
      %2263 = vmatmul.bf16.gmra.mxu0 %v591
      %v2264 = vpop.f32.mrf.mxu0
      %v2265 = vadd.f32 %v2252, %v2264
      %v2266 = vpop.f32.mrf.mxu0
      %2267 = vdwg.mxu0
      %2268 = vmatpush.bf16.msra.mxu0 %v1557
      %2269 = vmatpush.bf16.msra.mxu0 %v1549
      %2270 = vmatpush.bf16.msra.mxu0 %v1541
      %2271 = vmatpush.bf16.msra.mxu0 %v1533
      %2272 = vmatpush.bf16.msra.mxu0 %v1525
      %2273 = vmatpush.bf16.msra.mxu0 %v1517
      %2274 = vmatpush.bf16.msra.mxu0 %v1509
      %2275 = vmatpush.bf16.msra.mxu0 %v1501
      %2276 = vmatmul.bf16.gmra.mxu0 %v592
      %v2277 = vpop.f32.mrf.mxu0
      %v2278 = vadd.f32 %v2265, %v2277
      %v2279 = vpop.f32.mrf.mxu0
      %2280 = vdwg.mxu0
      %2281 = vmatpush.bf16.msra.mxu0 %v1621
      %2282 = vmatpush.bf16.msra.mxu0 %v1613
      %2283 = vmatpush.bf16.msra.mxu0 %v1605
      %2284 = vmatpush.bf16.msra.mxu0 %v1597
      %2285 = vmatpush.bf16.msra.mxu0 %v1589
      %2286 = vmatpush.bf16.msra.mxu0 %v1581
      %2287 = vmatpush.bf16.msra.mxu0 %v1573
      %2288 = vmatpush.bf16.msra.mxu0 %v1565
      %2289 = vmatmul.bf16.gmra.mxu0 %v593
      %v2290 = vpop.f32.mrf.mxu0
      %v2291 = vadd.f32 %v2278, %v2290
      %v2292 = vpop.f32.mrf.mxu0
      %2293 = vdwg.mxu0
      %v2294 = vmax.f32 %v1927, %v2135
      %v2295 = vmax.f32 %v1979, %v2187
      %v2296 = vmax.f32 %v2031, %v2239
      %v2297 = vmax.f32 %v2083, %v2291
      %v2298 = vmax.f32 %v2294, %v2296
      %v2299 = vmax.f32 %v2295, %v2297
      %v2300 = vmax.f32 %v2298, %v2299
      %2302 = vrot.lane.b32.xlu0 %v2300, 64
      %v2303 = vpop.permute.xlu0 %2302
      %v2305 = vmax.f32 %v2300, %v2303
      %v2306 = vld [vmem:[%s309] sm:$0x1]
      %v2308 = vperm.slane %v2306, 0
      %v2310 = vadd.f32 %v2305, %v2308
      %v2311 = vld [vmem:[%s314] sm:$0xf]
      %v2312 = vld [vmem:[%s314 + $0x4] sm:$0xf]
      %v2313 = vld [vmem:[%s314 + $0x8] sm:$0xf]
      %v2314 = vld [vmem:[%s314 + $0xc] sm:$0xf]
      %v2315 = vld [vmem:[%s314 + $0x10] sm:$0xf]
      %v2316 = vld [vmem:[%s314 + $0x14] sm:$0xf]
      %v2317 = vld [vmem:[%s314 + $0x18] sm:$0xf]
      %v2318 = vld [vmem:[%s314 + $0x1c] sm:$0xf]
      %v2319 = vpack.c.bf16 %v2310, %v2310
      %v2328 = vunpack.c.l.b16 %v2311
      %v2329 = vunpack.c.l.b16 %v2312
      %v2330 = vunpack.c.l.b16 %v2313
      %v2331 = vunpack.c.l.b16 %v2314
      %v2332 = vunpack.c.l.b16 %v2315
      %v2333 = vunpack.c.l.b16 %v2316
      %v2334 = vunpack.c.l.b16 %v2317
      %v2335 = vunpack.c.l.b16 %v2318
      %v2336 = vpack.c.b16 %v2329, %v2328
      %v2337 = vpack.c.b16 %v2331, %v2330
      %v2338 = vpack.c.b16 %v2333, %v2332
      %v2339 = vpack.c.b16 %v2335, %v2334
      %vm2344 = vcmask 523264
      %v2346 = vsel %vm2344, %v2319, 0
      %2348 = vmatpush.bf16.msra.mxu0 0
      %2349 = vmatpush.bf16.msra.mxu0 0
      %2350 = vmatpush.bf16.msra.mxu0 0
      %2351 = vmatpush.bf16.msra.mxu0 0
      %2352 = vmatpush.bf16.msra.mxu0 %v2339
      %2353 = vmatpush.bf16.msra.mxu0 %v2338
      %2354 = vmatpush.bf16.msra.mxu0 %v2337
      %2355 = vmatpush.bf16.msra.mxu0 %v2336
      %2356 = vmatmul.bf16.gmra.mxu0 %v2346
      %v2357 = vpop.f32.mrf.mxu0
      %v2358 = vadd.f32 0.0, %v2357
      %v2359 = vpop.f32.mrf.mxu0
      %2360 = vdwg.mxu0
      %2362 = vrot.lane.b32.xlu0 %v2358, 108
      %v2363 = vpop.permute.xlu0 %2362
      %v2365 = vmax.f32 %v2358, %v2363
      %2367 = vrot.lane.b32.xlu0 %v2365, 88
      %v2368 = vpop.permute.xlu0 %2367
      %v2370 = vmax.f32 %v2365, %v2368
      %v2371 = vld [vmem:[%s317] sm:$0x1]
      %v2373 = vperm.slane %v2371, 0
      %v2375 = vadd.f32 %v2370, %v2373
      %2377 = vrot.lane.b32.xlu0 %v2375, 64
      %v2378 = vpop.permute.xlu0 %2377
      %v2380 = vsel %vm2344, %v2310, %v2378
      %vm2381 = vcmask 687104
      %v2382 = vsel %vm2381, %v2380, 0.0
      %2383 = vst [vmem:[%s324] sm:$0xff] %v2382
      %p2384 = scmp.lt.s32.totalorder %s20, 3
      %s2385 = scalar_select %p2384, %s20, 3
      %p2386 = scmp.lt.s32.totalorder %s21, 0
      %s2387 = scalar_select %p2386, %s21, 0
      %s2388 = sadd.s32 %s2387, %s2385
      %s2389 = smul.addr %s2388, 8
      %s2390 = scalar_lea.vmem %s5, %s2389
      // Predicated region
      $region41: #{cnn4b_forward.1} parent=39 // pred_check
        %p2391 = pneg %p180
      $region42: #{cnn4b_forward.1} parent=39 // pred_check_branch
        %2393 = sbr.rel (%p2391) target = $region44
      $region43: #{cnn4b_forward.1} parent=39 // pred_region
        _
      $region44: #{cnn4b_forward.1} parent=39 // pred_fallthru
        _
    $region40: #{cnn4b_forward.1} parent=5 // pred_fallthru
      _
    %p2394 = scmp.le.s32.totalorder 2, %s11
    // Predicated region
    $region45: #{cnn4b_forward.1} parent=5 // pred_check
      %p2395 = pneg %p2394
    $region46: #{cnn4b_forward.1} parent=5 // pred_check_branch
      %2397 = sbr.rel (%p2395) target = $region48
    $region47: #{cnn4b_forward.1} parent=5 // pred_region
      %s2398 = ssub.s32 %s11, 2
      // Predicated region
      $region49: #{cnn4b_forward.1} parent=47 // pred_check
        %p2399 = pneg %p186
      $region50: #{cnn4b_forward.1} parent=47 // pred_check_branch
        %2401 = sbr.rel (%p2399) target = $region52
      $region51: #{cnn4b_forward.1} parent=47 // pred_region
        %p2402 = scmp.lt.s32.totalorder %s22, 3
        %s2403 = scalar_select %p2402, %s22, 3
        %p2404 = scmp.lt.s32.totalorder %s23, 0
        %s2405 = scalar_select %p2404, %s23, 0
        %s2406 = sadd.s32 %s2405, %s2403
        %s2407 = smul.addr %s2406, 8
        %s2408 = scalar_lea.vmem %s5, %s2407
      $region52: #{cnn4b_forward.1} parent=47 // pred_fallthru
        _
    $region48: #{cnn4b_forward.1} parent=5 // pred_fallthru
      _
  $region6: #{cnn4b_forward.1} parent=0 // loop_footer
    %s15 = sadd.s32 1, %s11
  $region7: #{cnn4b_forward.1} parent=0 // loop_footer_branch
    %10 = sbr.rel target = $region3
  $region8: #{cnn4b_forward.1} parent=0 // loop_exit
    _

</llo_original>
